<compile_context>
chip_gen: v6e
topology: v6e:2x2x1
jax: 0.10.0
libtpu: 0.0.40
codegen_flags: <defaults>
</compile_context>

<pallas_src>
from functools import partial

import jax
import jax.numpy as jnp
from jax.experimental import pallas as pl
from jax.experimental.pallas import tpu as pltpu

EPS = 1e-5


def _zero_border(pad_ref, H2, W2, C):
    """Zero only the 1-pixel border of the (H2+2, W2+2, C) padded scratch."""
    pad_ref[0:1, :, :] = jnp.zeros((1, W2 + 2, C), jnp.float32)
    pad_ref[H2 + 1:H2 + 2, :, :] = jnp.zeros((1, W2 + 2, C), jnp.float32)
    pad_ref[:, 0:1, :] = jnp.zeros((H2 + 2, 1, C), jnp.float32)
    pad_ref[:, W2 + 1:W2 + 2, :] = jnp.zeros((H2 + 2, 1, C), jnp.float32)


def _conv3x3(pad_ref, w_ref, H2, W2, C, COUT):
    """3x3 conv (pad=1) of one image from a zero-padded (H2+2, W2+2, C) scratch.

    All nine (ki, kj) taps are folded into the MXU contraction: a single
    matmul of (H2*W2, 9*C) x (9*C, COUT).  w_ref is (9*C, COUT) with the K
    axis ordered (ki, kj, c), matching the tap concatenation below.
    """
    taps = []
    for ki in range(3):
        for kj in range(3):
            taps.append(pad_ref[ki:ki + H2, kj:kj + W2, :])      # (H2, W2, C)
    lhs = jnp.concatenate(taps, axis=-1).reshape(H2 * W2, 9 * C)
    return jnp.dot(lhs, w_ref[...], preferred_element_type=jnp.float32)


def _sigmoid(x):
    # exp lands on the EUP; pl.reciprocal (exact) instead of an explicit divide.
    return pl.reciprocal(1.0 + jnp.exp(-x))


def _stats(acc):
    # (2, COUT): row 0 = sum, row 1 = sum of squares (single pass, tileable).
    return jnp.concatenate(
        [jnp.sum(acc, axis=0, keepdims=True),
         jnp.sum(acc * acc, axis=0, keepdims=True)], axis=0)


def _pool_conv1_kernel(x_ref, w_ref, y_ref, st_ref, pad_ref,
                       *, H2, W2, CIN, COUT):
    # x_ref: (1, H2, 2, W2, 2, CIN) -- 2x2 pool windows exposed by the wrapper.
    x = x_ref[0]
    pooled = jnp.max(jnp.max(x, axis=3), axis=1)                 # (H2, W2, CIN)

    _zero_border(pad_ref, H2, W2, CIN)
    pad_ref[1:H2 + 1, 1:W2 + 1, :] = pooled

    acc = _conv3x3(pad_ref, w_ref, H2, W2, CIN, COUT)            # (H2*W2, COUT)
    y_ref[0] = acc
    st_ref[0] = _stats(acc)


def _bn_sig_conv2_kernel(y1_ref, ab_ref, w_ref, y_ref, st_ref, pad_ref,
                         *, H2, W2, COUT):
    # ab_ref: (2, COUT) -> row 0 = scale, row 1 = shift (BN folded).
    h = _sigmoid(y1_ref[0] * ab_ref[0:1, :] + ab_ref[1:2, :])    # (H2*W2, COUT)

    _zero_border(pad_ref, H2, W2, COUT)
    pad_ref[1:H2 + 1, 1:W2 + 1, :] = h.reshape(H2, W2, COUT)

    acc = _conv3x3(pad_ref, w_ref, H2, W2, COUT, COUT)
    y_ref[0] = acc
    st_ref[0] = _stats(acc)


def _bn_sig_kernel(y2_ref, ab_ref, out_ref):
    out_ref[0] = _sigmoid(y2_ref[0] * ab_ref[0:1, :] + ab_ref[1:2, :])


def down_forward(x_nchw, w1_hwio, g1, b1, w2_hwio, g2, b2):
    """Down(in_ch, out_ch).forward.  x_nchw: (N,CIN,H,W) f32 -> (N,COUT,H/2,W/2)."""
    N, CIN, H, W = x_nchw.shape
    COUT = w1_hwio.shape[-1]
    H2, W2 = H // 2, W // 2
    M = H2 * W2

    # Glue: NCHW -> NHWC, expose the 2x2 pool windows, fold (ki,kj) into the K axis.
    x_nhwc = jnp.transpose(x_nchw, (0, 2, 3, 1)).astype(jnp.float32)
    x6 = x_nhwc.reshape(N, H2, 2, W2, 2, CIN)
    w1k = w1_hwio.reshape(9 * CIN, COUT).astype(jnp.float32)     # K order (ki,kj,c)
    w2k = w2_hwio.reshape(9 * COUT, COUT).astype(jnp.float32)

    cparams = pltpu.CompilerParams(
        dimension_semantics=("parallel",),       # shard images across TensorCores
        vmem_limit_bytes=48 * 1024 * 1024,       # per-image blocks; fits v7x's 64 MiB
    )

    act_shape = jax.ShapeDtypeStruct((N, M, COUT), jnp.float32)
    st_shape = jax.ShapeDtypeStruct((N, 2, COUT), jnp.float32)
    y_spec = pl.BlockSpec((1, M, COUT), lambda i: (i, 0, 0))
    st_spec = pl.BlockSpec((1, 2, COUT), lambda i: (i, 0, 0))
    ab_spec = pl.BlockSpec((2, COUT), lambda i: (0, 0))

    # ---- stage 1: maxpool + conv1 + partial stats (grid over images) ----
    y1, st1 = pl.pallas_call(
        partial(_pool_conv1_kernel, H2=H2, W2=W2, CIN=CIN, COUT=COUT),
        grid=(N,),
        in_specs=[
            pl.BlockSpec((1, H2, 2, W2, 2, CIN), lambda i: (i, 0, 0, 0, 0, 0)),
            pl.BlockSpec((9 * CIN, COUT), lambda i: (0, 0)),
        ],
        out_specs=[y_spec, st_spec],
        out_shape=(act_shape, st_shape),
        scratch_shapes=[pltpu.VMEM((H2 + 2, W2 + 2, CIN), jnp.float32)],
        compiler_params=cparams,
    )(x6, w1k)

    # ---- tiny glue: fold batch stats (biased var, train-mode BN) into scale/shift ----
    cnt = jnp.float32(N * M)

    def fold_bn(st, g, b):
        mean = jnp.sum(st[:, 0, :], axis=0) / cnt                # (COUT,)
        var = jnp.sum(st[:, 1, :], axis=0) / cnt - mean * mean   # biased variance
        scale = g * jax.lax.rsqrt(var + EPS)
        shift = b - mean * scale
        return jnp.stack([scale, shift], axis=0).astype(jnp.float32)   # (2, COUT)

    ab1 = fold_bn(st1, g1, b1)

    # ---- stage 2: BN1 + sigmoid + conv2 + partial stats ----
    y2, st2 = pl.pallas_call(
        partial(_bn_sig_conv2_kernel, H2=H2, W2=W2, COUT=COUT),
        grid=(N,),
        in_specs=[
            y_spec, ab_spec,
            pl.BlockSpec((9 * COUT, COUT), lambda i: (0, 0)),
        ],
        out_specs=[y_spec, st_spec],
        out_shape=(act_shape, st_shape),
        scratch_shapes=[pltpu.VMEM((H2 + 2, W2 + 2, COUT), jnp.float32)],
        compiler_params=cparams,
    )(y1, ab1, w2k)

    ab2 = fold_bn(st2, g2, b2)

    # ---- stage 3: BN2 + sigmoid ----
    out_flat = pl.pallas_call(
        _bn_sig_kernel,
        grid=(N,),
        in_specs=[y_spec, ab_spec],
        out_specs=y_spec,
        out_shape=act_shape,
        compiler_params=cparams,
    )(y2, ab2)

    out_nhwc = out_flat.reshape(N, H2, W2, COUT)
    return jnp.transpose(out_nhwc, (0, 3, 1, 2))                 # back to NCHW


def down_reference(x_nchw, w1_hwio, g1, b1, w2_hwio, g2, b2):
    """Pure-JAX reference mirroring the PyTorch module (validation only)."""
    xp = jax.lax.reduce_window(x_nchw, -jnp.inf, jax.lax.max,
                               (1, 1, 2, 2), (1, 1, 2, 2), "VALID")

    def conv_bn_sig(x, w_hwio, g, b):
        w_oihw = jnp.transpose(w_hwio, (3, 2, 0, 1))
        y = jax.lax.conv_general_dilated(
            x, w_oihw, window_strides=(1, 1), padding="SAME",
            dimension_numbers=("NCHW", "OIHW", "NCHW"))
        mean = jnp.mean(y, axis=(0, 2, 3), keepdims=True)
        var = jnp.mean((y - mean) ** 2, axis=(0, 2, 3), keepdims=True)
        y = (y - mean) * jax.lax.rsqrt(var + EPS) * g.reshape(1, -1, 1, 1) \
            + b.reshape(1, -1, 1, 1)
        return jax.nn.sigmoid(y)

    h = conv_bn_sig(xp, w1_hwio, g1, b1)
    return conv_bn_sig(h, w2_hwio, g2, b2)


if __name__ == "__main__":
    key = jax.random.PRNGKey(0)
    N, CIN, COUT, H, W = 2, 4, 8, 16, 16
    ks = jax.random.split(key, 7)

    x = jax.random.normal(ks[0], (N, CIN, H, W), jnp.float32)
    # Conv weights stored HWIO (PyTorch is OIHW; purely a storage convention here).
    w1 = 0.1 * jax.random.normal(ks[1], (3, 3, CIN, COUT), jnp.float32)
    w2 = 0.1 * jax.random.normal(ks[2], (3, 3, COUT, COUT), jnp.float32)
    g1 = 1.0 + 0.1 * jax.random.normal(ks[3], (COUT,), jnp.float32)
    b1 = 0.1 * jax.random.normal(ks[4], (COUT,), jnp.float32)
    g2 = 1.0 + 0.1 * jax.random.normal(ks[5], (COUT,), jnp.float32)
    b2 = 0.1 * jax.random.normal(ks[6], (COUT,), jnp.float32)

    out = jax.block_until_ready(down_forward(x, w1, g1, b1, w2, g2, b2))

    ref = down_reference(x, w1, g1, b1, w2, g2, b2)
    assert out.shape == (N, COUT, H // 2, W // 2), out.shape
    max_err = float(jnp.max(jnp.abs(out - ref)))
    assert jnp.allclose(out, ref, atol=1e-4, rtol=1e-4), max_err

    print("KERNEL_OK")
</pallas_src>

<mosaic_0001>
module attributes {stable_mosaic.version = 11 : i64} {
  func.func @_pool_conv1_kernel(%arg0: i32, %arg1: memref<1x8x2x8x2x4xf32, #tpu.memory_space<vmem>>, %arg2: memref<36x8xf32, #tpu.memory_space<vmem>>, %arg3: memref<1x64x8xf32, #tpu.memory_space<vmem>>, %arg4: memref<1x2x8xf32, #tpu.memory_space<vmem>>, %arg5: memref<10x10x4xf32, #tpu.memory_space<vmem>>) attributes {dimension_semantics = [#tpu.dimension_semantics<parallel>], iteration_bounds = array<i64: 2>, scalar_prefetch = 0 : i64, scratch_operands = 1 : i64, tpu.core_type = #tpu.core_type<tc>, window_params = [{transform_indices = @transform_0, window_bounds = array<i64: 1, 8, 2, 8, 2, 4>}, {pipeline_mode = #tpu.pipeline_mode<synchronous>, transform_indices = @transform_1, window_bounds = array<i64: 36, 8>}, {transform_indices = @transform_2, window_bounds = array<i64: 1, 64, 8>}, {transform_indices = @transform_3, window_bounds = array<i64: 1, 2, 8>}]} {
    %c0 = arith.constant 0 : index
    %c0_0 = arith.constant 0 : index
    %c0_1 = arith.constant 0 : index
    %c0_2 = arith.constant 0 : index
    %c0_3 = arith.constant 0 : index
    %c0_4 = arith.constant 0 : index
    %0 = vector.load %arg1[%c0, %c0_0, %c0_1, %c0_2, %c0_3, %c0_4] : memref<1x8x2x8x2x4xf32, #tpu.memory_space<vmem>>, vector<1x8x2x8x2x4xf32>
    %1 = vector.shape_cast %0 : vector<1x8x2x8x2x4xf32> to vector<8x2x8x2x4xf32>
    %cst = arith.constant dense<0xFF800000> : vector<8x2x8x4xf32>
    %2 = vector.multi_reduction <maximumf>, %1, %cst [3] : vector<8x2x8x2x4xf32> to vector<8x2x8x4xf32>
    %cst_5 = arith.constant dense<0xFF800000> : vector<8x8x4xf32>
    %3 = vector.multi_reduction <maximumf>, %2, %cst_5 [1] : vector<8x2x8x4xf32> to vector<8x8x4xf32>
    %cst_6 = arith.constant 0.000000e+00 : f32
    %4 = vector.broadcast %cst_6 : f32 to vector<1x10x4xf32>
    %c0_7 = arith.constant 0 : index
    %c0_8 = arith.constant 0 : index
    %c0_9 = arith.constant 0 : index
    %5 = vector.load %arg5[%c0_7, %c0_8, %c0_9] : memref<10x10x4xf32, #tpu.memory_space<vmem>>, vector<1x10x4xf32>
    tpu.vector_store %arg5[%c0_7, %c0_8, %c0_9], %4 {strides = array<i32>} : memref<10x10x4xf32, #tpu.memory_space<vmem>>, vector<1x10x4xf32>,
    %cst_10 = arith.constant 0.000000e+00 : f32
    %6 = vector.broadcast %cst_10 : f32 to vector<1x10x4xf32>
    %c9 = arith.constant 9 : index
    %c0_11 = arith.constant 0 : index
    %c0_12 = arith.constant 0 : index
    %7 = vector.load %arg5[%c9, %c0_11, %c0_12] : memref<10x10x4xf32, #tpu.memory_space<vmem>>, vector<1x10x4xf32>
    tpu.vector_store %arg5[%c9, %c0_11, %c0_12], %6 {strides = array<i32>} : memref<10x10x4xf32, #tpu.memory_space<vmem>>, vector<1x10x4xf32>,
    %cst_13 = arith.constant 0.000000e+00 : f32
    %8 = vector.broadcast %cst_13 : f32 to vector<10x1x4xf32>
    %c0_14 = arith.constant 0 : index
    %c0_15 = arith.constant 0 : index
    %c0_16 = arith.constant 0 : index
    %9 = vector.load %arg5[%c0_14, %c0_15, %c0_16] : memref<10x10x4xf32, #tpu.memory_space<vmem>>, vector<10x1x4xf32>
    tpu.vector_store %arg5[%c0_14, %c0_15, %c0_16], %8 {strides = array<i32>} : memref<10x10x4xf32, #tpu.memory_space<vmem>>, vector<10x1x4xf32>,
    %cst_17 = arith.constant 0.000000e+00 : f32
    %10 = vector.broadcast %cst_17 : f32 to vector<10x1x4xf32>
    %c0_18 = arith.constant 0 : index
    %c9_19 = arith.constant 9 : index
    %c0_20 = arith.constant 0 : index
    %11 = vector.load %arg5[%c0_18, %c9_19, %c0_20] : memref<10x10x4xf32, #tpu.memory_space<vmem>>, vector<10x1x4xf32>
    tpu.vector_store %arg5[%c0_18, %c9_19, %c0_20], %10 {strides = array<i32>} : memref<10x10x4xf32, #tpu.memory_space<vmem>>, vector<10x1x4xf32>,
    %c1 = arith.constant 1 : index
    %c1_21 = arith.constant 1 : index
    %c0_22 = arith.constant 0 : index
    %12 = vector.load %arg5[%c1, %c1_21, %c0_22] : memref<10x10x4xf32, #tpu.memory_space<vmem>>, vector<8x8x4xf32>
    tpu.vector_store %arg5[%c1, %c1_21, %c0_22], %3 {strides = array<i32>} : memref<10x10x4xf32, #tpu.memory_space<vmem>>, vector<8x8x4xf32>,
    %c0_23 = arith.constant 0 : index
    %c0_24 = arith.constant 0 : index
    %c0_25 = arith.constant 0 : index
    %13 = vector.load %arg5[%c0_23, %c0_24, %c0_25] : memref<10x10x4xf32, #tpu.memory_space<vmem>>, vector<8x8x4xf32>
    %c0_26 = arith.constant 0 : index
    %c1_27 = arith.constant 1 : index
    %c0_28 = arith.constant 0 : index
    %14 = vector.load %arg5[%c0_26, %c1_27, %c0_28] : memref<10x10x4xf32, #tpu.memory_space<vmem>>, vector<8x8x4xf32>
    %c0_29 = arith.constant 0 : index
    %c2 = arith.constant 2 : index
    %c0_30 = arith.constant 0 : index
    %15 = vector.load %arg5[%c0_29, %c2, %c0_30] : memref<10x10x4xf32, #tpu.memory_space<vmem>>, vector<8x8x4xf32>
    %c1_31 = arith.constant 1 : index
    %c0_32 = arith.constant 0 : index
    %c0_33 = arith.constant 0 : index
    %16 = vector.load %arg5[%c1_31, %c0_32, %c0_33] : memref<10x10x4xf32, #tpu.memory_space<vmem>>, vector<8x8x4xf32>
    %c1_34 = arith.constant 1 : index
    %c1_35 = arith.constant 1 : index
    %c0_36 = arith.constant 0 : index
    %17 = vector.load %arg5[%c1_34, %c1_35, %c0_36] : memref<10x10x4xf32, #tpu.memory_space<vmem>>, vector<8x8x4xf32>
    %c1_37 = arith.constant 1 : index
    %c2_38 = arith.constant 2 : index
    %c0_39 = arith.constant 0 : index
    %18 = vector.load %arg5[%c1_37, %c2_38, %c0_39] : memref<10x10x4xf32, #tpu.memory_space<vmem>>, vector<8x8x4xf32>
    %c2_40 = arith.constant 2 : index
    %c0_41 = arith.constant 0 : index
    %c0_42 = arith.constant 0 : index
    %19 = vector.load %arg5[%c2_40, %c0_41, %c0_42] : memref<10x10x4xf32, #tpu.memory_space<vmem>>, vector<8x8x4xf32>
    %c2_43 = arith.constant 2 : index
    %c1_44 = arith.constant 1 : index
    %c0_45 = arith.constant 0 : index
    %20 = vector.load %arg5[%c2_43, %c1_44, %c0_45] : memref<10x10x4xf32, #tpu.memory_space<vmem>>, vector<8x8x4xf32>
    %c2_46 = arith.constant 2 : index
    %c2_47 = arith.constant 2 : index
    %c0_48 = arith.constant 0 : index
    %21 = vector.load %arg5[%c2_46, %c2_47, %c0_48] : memref<10x10x4xf32, #tpu.memory_space<vmem>>, vector<8x8x4xf32>
    %22 = tpu.concatenate %13, %14, %15, %16, %17, %18, %19, %20, %21 in 2 : vector<8x8x4xf32>, vector<8x8x4xf32>, vector<8x8x4xf32>, vector<8x8x4xf32>, vector<8x8x4xf32>, vector<8x8x4xf32>, vector<8x8x4xf32>, vector<8x8x4xf32>, vector<8x8x4xf32> -> vector<8x8x36xf32>
    %23 = vector.shape_cast %22 : vector<8x8x36xf32> to vector<64x36xf32>
    %c0_49 = arith.constant 0 : index
    %c0_50 = arith.constant 0 : index
    %24 = vector.load %arg2[%c0_49, %c0_50] : memref<36x8xf32, #tpu.memory_space<vmem>>, vector<36x8xf32>
    %cst_51 = arith.constant dense<0.000000e+00> : vector<64x8xf32>
    %25 = tpu.matmul %23, %24, %cst_51 {dimension_numbers = #tpu.dot_dimension_numbers<[1], [0], [0], [1], [0, 0, 1, 1], [], []>} : vector<64x36xf32>, vector<36x8xf32>, vector<64x8xf32> -> vector<64x8xf32>
    %c0_52 = arith.constant 0 : index
    %c0_53 = arith.constant 0 : index
    %c0_54 = arith.constant 0 : index
    %26 = vector.load %arg3[%c0_52, %c0_53, %c0_54] : memref<1x64x8xf32, #tpu.memory_space<vmem>>, vector<1x64x8xf32>
    %27 = vector.shape_cast %26 : vector<1x64x8xf32> to vector<64x8xf32>
    %28 = vector.shape_cast %25 : vector<64x8xf32> to vector<1x64x8xf32>
    tpu.vector_store %arg3[%c0_52, %c0_53, %c0_54], %28 {strides = array<i32>} : memref<1x64x8xf32, #tpu.memory_space<vmem>>, vector<1x64x8xf32>,
    %cst_55 = arith.constant dense<0.000000e+00> : vector<8xf32>
    %29 = vector.multi_reduction <add>, %25, %cst_55 [0] : vector<64x8xf32> to vector<8xf32>
    %30 = vector.shape_cast %29 : vector<8xf32> to vector<1x8xf32>
    %31 = arith.mulf %25, %25 : vector<64x8xf32>
    %cst_56 = arith.constant dense<0.000000e+00> : vector<8xf32>
    %32 = vector.multi_reduction <add>, %31, %cst_56 [0] : vector<64x8xf32> to vector<8xf32>
    %33 = vector.shape_cast %32 : vector<8xf32> to vector<1x8xf32>
    %34 = tpu.concatenate %30, %33 in 0 : vector<1x8xf32>, vector<1x8xf32> -> vector<2x8xf32>
    %c0_57 = arith.constant 0 : index
    %c0_58 = arith.constant 0 : index
    %c0_59 = arith.constant 0 : index
    %35 = vector.load %arg4[%c0_57, %c0_58, %c0_59] : memref<1x2x8xf32, #tpu.memory_space<vmem>>, vector<1x2x8xf32>
    %36 = vector.shape_cast %35 : vector<1x2x8xf32> to vector<2x8xf32>
    %37 = vector.shape_cast %34 : vector<2x8xf32> to vector<1x2x8xf32>
    tpu.vector_store %arg4[%c0_57, %c0_58, %c0_59], %37 {strides = array<i32>} : memref<1x2x8xf32, #tpu.memory_space<vmem>>, vector<1x2x8xf32>,
    return
  }
  func.func @transform_0(%arg0: i32) -> (i32, i32, i32, i32, i32, i32) {
    %c0_i32 = arith.constant 0 : i32
    %c0_i32_0 = arith.constant 0 : i32
    %c0_i32_1 = arith.constant 0 : i32
    %c0_i32_2 = arith.constant 0 : i32
    %c0_i32_3 = arith.constant 0 : i32
    %c0_i32_4 = arith.constant 0 : i32
    return %arg0, %c0_i32, %c0_i32_0, %c0_i32_1, %c0_i32_2, %c0_i32_3 : i32, i32, i32, i32, i32, i32
  }
  func.func @transform_1(%arg0: i32) -> (i32, i32) {
    %c0_i32 = arith.constant 0 : i32
    %c0_i32_0 = arith.constant 0 : i32
    %c0_i32_1 = arith.constant 0 : i32
    return %c0_i32, %c0_i32_0 : i32, i32
  }
  func.func @transform_2(%arg0: i32) -> (i32, i32, i32) {
    %c0_i32 = arith.constant 0 : i32
    %c0_i32_0 = arith.constant 0 : i32
    %c0_i32_1 = arith.constant 0 : i32
    return %arg0, %c0_i32, %c0_i32_0 : i32, i32, i32
  }
  func.func @transform_3(%arg0: i32) -> (i32, i32, i32) {
    %c0_i32 = arith.constant 0 : i32
    %c0_i32_0 = arith.constant 0 : i32
    %c0_i32_1 = arith.constant 0 : i32
    return %arg0, %c0_i32, %c0_i32_0 : i32, i32, i32
  }
}

</mosaic_0001>

<llo_original>
// kernel: tpu_custom_call.1
$region0: #{tpu_custom_call.1}
  #allocation0 [shape = 'u32[]', space=smem, size = 0x4, offset = 0x4, fixed_abs, tag = 'smem constant byte address 0x4 - core index']
  #allocation1 [shape = 'u32[144,128]{1,0:T(1,128)}', space=vmem, size = 0x12000, scoped, tag = 'internal scratch']
  #allocation2 [shape = 'f32[10,10,4]{2,1,0:T(8,128)}', space=vmem, size = 0x14000, scoped, tag = 'scratch operand']
  %s0 = inlined_call_operand.vmem [shape: f32[2,8,2,8,2,4], index: 0, kind: input, shape index: {}]
  %s1 = inlined_call_operand.vmem [shape: f32[36,8], index: 1, kind: input, shape index: {}]
  %s2 = inlined_call_operand.vmem [shape: f32[2,64,8], index: 2, kind: output, shape index: {0}]
  %s3 = inlined_call_operand.hbm [shape: f32[2,2,8], index: 3, kind: output, shape index: {1}]
  %4 = xla_tuple %s2, %s3
  %s5 = sld [smem:[#allocation0]]
  $region49: #{tpu_custom_call.1} parent=0
    _
  %s7 = ssub.s32 1, %s5
  %s8 = scalar_select 0, %s7, %s5
  $region1: #{tpu_custom_call.1} parent=0
    #allocation3 [shape = 'u8[2048]{0}', space=vmem, size = 0x800, scoped, tag = 'output window, operand 1']
    #allocation4 [shape = 's32[2]{0}', space=sflag, size = 0x8, scoped, tag = 'scoped memory for tpu_custom_call.1']
    %9 = vsyncpa [#allocation4], 0
    %s10 = scalar_lea.sflag [#allocation4], 1
    %11 = vsyncpa %s10, 0
    loop: start=0, step=1, limit=4
    $region2: #{tpu_custom_call.1} parent=1 // loop_pre_header
      _
    $region3: #{tpu_custom_call.1} parent=1 // loop_header
      %s13 = sphi 0, %s17
      %p14 = scmp.ge.s32.totalorder %s13, 4
      %s23 = sphi 0, %s25
      %s26 = sphi 0, %s23
      %s27 = sphi 0, %s26
      %s43 = sphi 0, %s27
      %s47 = sphi 0, %s47
      %s49 = sphi 0, %s47
      %s50 = sphi 0, %s49
      %s64 = sphi 0, %s50
      %s70 = sphi 0, %s72
      %s73 = sphi 0, %s70
      %s74 = sphi 0, %s73
      %s90 = sphi 0, %s74
      %s96 = sphi 0, %s98
      %s99 = sphi 0, %s96
      %s100 = sphi 0, %s99
      %s116 = sphi 0, %s100
    $region4: #{tpu_custom_call.1} parent=1 // loop_header_branch
      %16 = sbr.rel (%p14) target = $region8
    $region5: #{tpu_custom_call.1} parent=1 // loop_body
      %s18 = ssub.s32 %s13, 1
      %s19 = ssub.s32 %s13, 2
      %s20 = sadd.s32 %s13, 1
      %s21 = ssub.s32 %s13, %s20
      %p22 = scmp.eq.s32.totalorder %s21, 0
      %s24 = sadd.s32 %s23, 1
      %s25 = scalar_select %p22, %s23, %s24
      %p28 = pneg %p22
      %p29 = scmp.eq.s32.totalorder %s13, 1
      %p30 = por %p28, %p29
      %p31 = scmp.ne.s32.totalorder %s23, %s26
      %p32 = scmp.eq.s32.totalorder %s13, 0
      %p33 = por %p31, %p32
      %p34 = scmp.ne.s32.totalorder %s23, %s26
      %p35 = scmp.eq.s32.totalorder %s18, 1
      %p36 = por %p34, %p35
      %p37 = scmp.ne.s32.totalorder %s26, %s27
      %p38 = scmp.eq.s32.totalorder %s18, 0
      %p39 = por %p37, %p38
      %p40 = scmp.ne.s32.totalorder %s26, %s27
      %p41 = scmp.eq.s32.totalorder %s19, 1
      %p42 = por %p40, %p41
      %p44 = scmp.ne.s32.totalorder %s27, %s43
      %p45 = scmp.eq.s32.totalorder %s19, 0
      %p46 = por %p44, %p45
      %s48 = sadd.s32 %s47, 1
      %p51 = scmp.eq.s32.totalorder %s13, 1
      %p52 = scmp.ne.s32.totalorder %s47, %s49
      %p53 = scmp.eq.s32.totalorder %s13, 0
      %p54 = por %p52, %p53
      %p55 = scmp.ne.s32.totalorder %s47, %s49
      %p56 = scmp.eq.s32.totalorder %s18, 1
      %p57 = por %p55, %p56
      %p58 = scmp.ne.s32.totalorder %s49, %s50
      %p59 = scmp.eq.s32.totalorder %s18, 0
      %p60 = por %p58, %p59
      %p61 = scmp.ne.s32.totalorder %s49, %s50
      %p62 = scmp.eq.s32.totalorder %s19, 1
      %p63 = por %p61, %p62
      %p65 = scmp.ne.s32.totalorder %s50, %s64
      %p66 = scmp.eq.s32.totalorder %s19, 0
      %p67 = por %p65, %p66
      %s68 = ssub.s32 %s13, %s20
      %p69 = scmp.eq.s32.totalorder %s68, 0
      %s71 = sadd.s32 %s70, 1
      %s72 = scalar_select %p69, %s70, %s71
      %p75 = pneg %p69
      %p76 = scmp.eq.s32.totalorder %s13, 1
      %p77 = por %p75, %p76
      %p78 = scmp.ne.s32.totalorder %s70, %s73
      %p79 = scmp.eq.s32.totalorder %s13, 0
      %p80 = por %p78, %p79
      %p81 = scmp.ne.s32.totalorder %s70, %s73
      %p82 = scmp.eq.s32.totalorder %s18, 1
      %p83 = por %p81, %p82
      %p84 = scmp.ne.s32.totalorder %s73, %s74
      %p85 = scmp.eq.s32.totalorder %s18, 0
      %p86 = por %p84, %p85
      %p87 = scmp.ne.s32.totalorder %s73, %s74
      %p88 = scmp.eq.s32.totalorder %s19, 1
      %p89 = por %p87, %p88
      %p91 = scmp.ne.s32.totalorder %s74, %s90
      %p92 = scmp.eq.s32.totalorder %s19, 0
      %p93 = por %p91, %p92
      %s94 = ssub.s32 %s13, %s20
      %p95 = scmp.eq.s32.totalorder %s94, 0
      %s97 = sadd.s32 %s96, 1
      %s98 = scalar_select %p95, %s96, %s97
      %p101 = pneg %p95
      %p102 = scmp.eq.s32.totalorder %s13, 1
      %p103 = por %p101, %p102
      %p104 = scmp.ne.s32.totalorder %s96, %s99
      %p105 = scmp.eq.s32.totalorder %s13, 0
      %p106 = por %p104, %p105
      %p107 = scmp.ne.s32.totalorder %s96, %s99
      %p108 = scmp.eq.s32.totalorder %s18, 1
      %p109 = por %p107, %p108
      %p110 = scmp.ne.s32.totalorder %s99, %s100
      %p111 = scmp.eq.s32.totalorder %s18, 0
      %p112 = por %p110, %p111
      %p113 = scmp.ne.s32.totalorder %s99, %s100
      %p114 = scmp.eq.s32.totalorder %s19, 1
      %p115 = por %p113, %p114
      %p117 = scmp.ne.s32.totalorder %s100, %s116
      %p118 = scmp.eq.s32.totalorder %s19, 0
      %p119 = por %p117, %p118
      %p120 = scmp.le.s32.totalorder 1, %s13
      %p121 = scmp.lt.s32.totalorder %s13, 3
      %p122 = pnand %p120, %p121
      %p123 = pneg %p122
      // Predicated region
      $region9: #{tpu_custom_call.1} parent=5 // pred_check
        _
      $region10: #{tpu_custom_call.1} parent=5 // pred_check_branch
        %125 = sbr.rel (%p122) target = $region12
      $region11: #{tpu_custom_call.1} parent=5 // pred_region
        %s126 = ssub.s32 %s13, 1
        // Predicated region
        $region13: #{tpu_custom_call.1} parent=11 // pred_check
          %p127 = pneg %p60
        $region14: #{tpu_custom_call.1} parent=11 // pred_check_branch
          %129 = sbr.rel (%p127) target = $region16
        $region15: #{tpu_custom_call.1} parent=11 // pred_region
          _
        $region16: #{tpu_custom_call.1} parent=11 // pred_fallthru
          _
      $region12: #{tpu_custom_call.1} parent=5 // pred_fallthru
        _
      %p130 = scmp.lt.s32.totalorder %s13, 2
      // Predicated region
      $region17: #{tpu_custom_call.1} parent=5 // pred_check
        %p131 = pneg %p130
      $region18: #{tpu_custom_call.1} parent=5 // pred_check_branch
        %133 = sbr.rel (%p131) target = $region20
      $region19: #{tpu_custom_call.1} parent=5 // pred_region
        // Predicated region
        $region21: #{tpu_custom_call.1} parent=19 // pred_check
          %p134 = pneg %p33
        $region22: #{tpu_custom_call.1} parent=19 // pred_check_branch
          %136 = sbr.rel (%p134) target = $region24
        $region23: #{tpu_custom_call.1} parent=19 // pred_region
          %p137 = scmp.lt.s32.totalorder %s13, 1
          %s138 = scalar_select %p137, %s13, 1
          %s139 = smul.addr %s138, 128
          %s140 = smul.addr %s139, 2
          %s141 = scalar_lea.vmem %s0, %s140
        $region24: #{tpu_custom_call.1} parent=19 // pred_fallthru
          _
      $region20: #{tpu_custom_call.1} parent=5 // pred_fallthru
        _
      %p142 = scmp.le.s32.totalorder 1, %s13
      %p143 = scmp.lt.s32.totalorder %s13, 3
      %p144 = pnand %p142, %p143
      %p145 = pneg %p144
      // Predicated region
      $region25: #{tpu_custom_call.1} parent=5 // pred_check
        _
      $region26: #{tpu_custom_call.1} parent=5 // pred_check_branch
        %147 = sbr.rel (%p144) target = $region28
      $region27: #{tpu_custom_call.1} parent=5 // pred_region
        %s148 = ssub.s32 %s13, 1
        %p149 = scmp.lt.s32.totalorder %s18, 1
        %s150 = scalar_select %p149, %s18, 1
        %s151 = smul.addr %s150, 128
        %s152 = smul.addr %s151, 2
        %s153 = scalar_lea.vmem %s0, %s152
        %p154 = pneg %p39
        %p155 = pneg %p36
        %p156 = pneg %p60
        %p157 = pneg %p57
        %p158 = pneg %p86
        %p159 = pneg %p83
        %p160 = scmp.lt.s32.totalorder %s18, 1
        %s161 = scalar_select %p160, %s18, 1
        %s162 = smul.addr %s161, 8
        %s163 = smul.addr %s162, 8
        %s164 = scalar_lea.vmem %s2, %s163
        %p165 = pneg %p112
        %p166 = pneg %p109
        %s167 = sand.u32 %s99, 1
        %s168 = scalar_lea.sflag [#allocation4], %s167
        %s169 = sand.u32 %s99, 1
        %s170 = smul.addr %s169, 2
        %s171 = scalar_lea.vmem [#allocation3], %s170
        %p172 = scmp.lt.s32.totalorder %s18, 1
        %s173 = scalar_select %p172, %s18, 1
        %s174 = smul.addr %s173, 128
        %s175 = smul.addr %s174, 2
        %s176 = scalar_lea.vmem %s0, %s175
        %p177 = scmp.lt.s32.totalorder %s18, 1
        %s178 = scalar_select %p177, %s18, 1
        %s179 = smul.addr %s178, 8
        %s180 = smul.addr %s179, 8
        %s181 = scalar_lea.vmem %s2, %s180
        %v182 = vld [vmem:[%s176] sm:$0x3]
        %v183 = vld [vmem:[%s176 + $0x2] sm:$0x3]
        %v184 = vld [vmem:[%s176 + $0x4] sm:$0x3]
        %v185 = vld [vmem:[%s176 + $0x6] sm:$0x3]
        %v186 = vld [vmem:[%s176 + $0x8] sm:$0x3]
        %v187 = vld [vmem:[%s176 + $0xa] sm:$0x3]
        %v188 = vld [vmem:[%s176 + $0xc] sm:$0x3]
        %v189 = vld [vmem:[%s176 + $0xe] sm:$0x3]
        %v190 = vld [vmem:[%s176 + $0x10] sm:$0x3]
        %v191 = vld [vmem:[%s176 + $0x12] sm:$0x3]
        %v192 = vld [vmem:[%s176 + $0x14] sm:$0x3]
        %v193 = vld [vmem:[%s176 + $0x16] sm:$0x3]
        %v194 = vld [vmem:[%s176 + $0x18] sm:$0x3]
        %v195 = vld [vmem:[%s176 + $0x1a] sm:$0x3]
        %v196 = vld [vmem:[%s176 + $0x1c] sm:$0x3]
        %v197 = vld [vmem:[%s176 + $0x1e] sm:$0x3]
        %v198 = vld [vmem:[%s176 + $0x20] sm:$0x3]
        %v199 = vld [vmem:[%s176 + $0x22] sm:$0x3]
        %v200 = vld [vmem:[%s176 + $0x24] sm:$0x3]
        %v201 = vld [vmem:[%s176 + $0x26] sm:$0x3]
        %v202 = vld [vmem:[%s176 + $0x28] sm:$0x3]
        %v203 = vld [vmem:[%s176 + $0x2a] sm:$0x3]
        %v204 = vld [vmem:[%s176 + $0x2c] sm:$0x3]
        %v205 = vld [vmem:[%s176 + $0x2e] sm:$0x3]
        %v206 = vld [vmem:[%s176 + $0x30] sm:$0x3]
        %v207 = vld [vmem:[%s176 + $0x32] sm:$0x3]
        %v208 = vld [vmem:[%s176 + $0x34] sm:$0x3]
        %v209 = vld [vmem:[%s176 + $0x36] sm:$0x3]
        %v210 = vld [vmem:[%s176 + $0x38] sm:$0x3]
        %v211 = vld [vmem:[%s176 + $0x3a] sm:$0x3]
        %v212 = vld [vmem:[%s176 + $0x3c] sm:$0x3]
        %v213 = vld [vmem:[%s176 + $0x3e] sm:$0x3]
        %v214 = vld [vmem:[%s176 + $0x40] sm:$0x3]
        %v215 = vld [vmem:[%s176 + $0x42] sm:$0x3]
        %v216 = vld [vmem:[%s176 + $0x44] sm:$0x3]
        %v217 = vld [vmem:[%s176 + $0x46] sm:$0x3]
        %v218 = vld [vmem:[%s176 + $0x48] sm:$0x3]
        %v219 = vld [vmem:[%s176 + $0x4a] sm:$0x3]
        %v220 = vld [vmem:[%s176 + $0x4c] sm:$0x3]
        %v221 = vld [vmem:[%s176 + $0x4e] sm:$0x3]
        %v222 = vld [vmem:[%s176 + $0x50] sm:$0x3]
        %v223 = vld [vmem:[%s176 + $0x52] sm:$0x3]
        %v224 = vld [vmem:[%s176 + $0x54] sm:$0x3]
        %v225 = vld [vmem:[%s176 + $0x56] sm:$0x3]
        %v226 = vld [vmem:[%s176 + $0x58] sm:$0x3]
        %v227 = vld [vmem:[%s176 + $0x5a] sm:$0x3]
        %v228 = vld [vmem:[%s176 + $0x5c] sm:$0x3]
        %v229 = vld [vmem:[%s176 + $0x5e] sm:$0x3]
        %v230 = vld [vmem:[%s176 + $0x60] sm:$0x3]
        %v231 = vld [vmem:[%s176 + $0x62] sm:$0x3]
        %v232 = vld [vmem:[%s176 + $0x64] sm:$0x3]
        %v233 = vld [vmem:[%s176 + $0x66] sm:$0x3]
        %v234 = vld [vmem:[%s176 + $0x68] sm:$0x3]
        %v235 = vld [vmem:[%s176 + $0x6a] sm:$0x3]
        %v236 = vld [vmem:[%s176 + $0x6c] sm:$0x3]
        %v237 = vld [vmem:[%s176 + $0x6e] sm:$0x3]
        %v238 = vld [vmem:[%s176 + $0x70] sm:$0x3]
        %v239 = vld [vmem:[%s176 + $0x72] sm:$0x3]
        %v240 = vld [vmem:[%s176 + $0x74] sm:$0x3]
        %v241 = vld [vmem:[%s176 + $0x76] sm:$0x3]
        %v242 = vld [vmem:[%s176 + $0x78] sm:$0x3]
        %v243 = vld [vmem:[%s176 + $0x7a] sm:$0x3]
        %v244 = vld [vmem:[%s176 + $0x7c] sm:$0x3]
        %v245 = vld [vmem:[%s176 + $0x7e] sm:$0x3]
        %v246 = vld [vmem:[%s176 + $0x80] sm:$0x3]
        %v247 = vld [vmem:[%s176 + $0x82] sm:$0x3]
        %v248 = vld [vmem:[%s176 + $0x84] sm:$0x3]
        %v249 = vld [vmem:[%s176 + $0x86] sm:$0x3]
        %v250 = vld [vmem:[%s176 + $0x88] sm:$0x3]
        %v251 = vld [vmem:[%s176 + $0x8a] sm:$0x3]
        %v252 = vld [vmem:[%s176 + $0x8c] sm:$0x3]
        %v253 = vld [vmem:[%s176 + $0x8e] sm:$0x3]
        %v254 = vld [vmem:[%s176 + $0x90] sm:$0x3]
        %v255 = vld [vmem:[%s176 + $0x92] sm:$0x3]
        %v256 = vld [vmem:[%s176 + $0x94] sm:$0x3]
        %v257 = vld [vmem:[%s176 + $0x96] sm:$0x3]
        %v258 = vld [vmem:[%s176 + $0x98] sm:$0x3]
        %v259 = vld [vmem:[%s176 + $0x9a] sm:$0x3]
        %v260 = vld [vmem:[%s176 + $0x9c] sm:$0x3]
        %v261 = vld [vmem:[%s176 + $0x9e] sm:$0x3]
        %v262 = vld [vmem:[%s176 + $0xa0] sm:$0x3]
        %v263 = vld [vmem:[%s176 + $0xa2] sm:$0x3]
        %v264 = vld [vmem:[%s176 + $0xa4] sm:$0x3]
        %v265 = vld [vmem:[%s176 + $0xa6] sm:$0x3]
        %v266 = vld [vmem:[%s176 + $0xa8] sm:$0x3]
        %v267 = vld [vmem:[%s176 + $0xaa] sm:$0x3]
        %v268 = vld [vmem:[%s176 + $0xac] sm:$0x3]
        %v269 = vld [vmem:[%s176 + $0xae] sm:$0x3]
        %v270 = vld [vmem:[%s176 + $0xb0] sm:$0x3]
        %v271 = vld [vmem:[%s176 + $0xb2] sm:$0x3]
        %v272 = vld [vmem:[%s176 + $0xb4] sm:$0x3]
        %v273 = vld [vmem:[%s176 + $0xb6] sm:$0x3]
        %v274 = vld [vmem:[%s176 + $0xb8] sm:$0x3]
        %v275 = vld [vmem:[%s176 + $0xba] sm:$0x3]
        %v276 = vld [vmem:[%s176 + $0xbc] sm:$0x3]
        %v277 = vld [vmem:[%s176 + $0xbe] sm:$0x3]
        %v278 = vld [vmem:[%s176 + $0xc0] sm:$0x3]
        %v279 = vld [vmem:[%s176 + $0xc2] sm:$0x3]
        %v280 = vld [vmem:[%s176 + $0xc4] sm:$0x3]
        %v281 = vld [vmem:[%s176 + $0xc6] sm:$0x3]
        %v282 = vld [vmem:[%s176 + $0xc8] sm:$0x3]
        %v283 = vld [vmem:[%s176 + $0xca] sm:$0x3]
        %v284 = vld [vmem:[%s176 + $0xcc] sm:$0x3]
        %v285 = vld [vmem:[%s176 + $0xce] sm:$0x3]
        %v286 = vld [vmem:[%s176 + $0xd0] sm:$0x3]
        %v287 = vld [vmem:[%s176 + $0xd2] sm:$0x3]
        %v288 = vld [vmem:[%s176 + $0xd4] sm:$0x3]
        %v289 = vld [vmem:[%s176 + $0xd6] sm:$0x3]
        %v290 = vld [vmem:[%s176 + $0xd8] sm:$0x3]
        %v291 = vld [vmem:[%s176 + $0xda] sm:$0x3]
        %v292 = vld [vmem:[%s176 + $0xdc] sm:$0x3]
        %v293 = vld [vmem:[%s176 + $0xde] sm:$0x3]
        %v294 = vld [vmem:[%s176 + $0xe0] sm:$0x3]
        %v295 = vld [vmem:[%s176 + $0xe2] sm:$0x3]
        %v296 = vld [vmem:[%s176 + $0xe4] sm:$0x3]
        %v297 = vld [vmem:[%s176 + $0xe6] sm:$0x3]
        %v298 = vld [vmem:[%s176 + $0xe8] sm:$0x3]
        %v299 = vld [vmem:[%s176 + $0xea] sm:$0x3]
        %v300 = vld [vmem:[%s176 + $0xec] sm:$0x3]
        %v301 = vld [vmem:[%s176 + $0xee] sm:$0x3]
        %v302 = vld [vmem:[%s176 + $0xf0] sm:$0x3]
        %v303 = vld [vmem:[%s176 + $0xf2] sm:$0x3]
        %v304 = vld [vmem:[%s176 + $0xf4] sm:$0x3]
        %v305 = vld [vmem:[%s176 + $0xf6] sm:$0x3]
        %v306 = vld [vmem:[%s176 + $0xf8] sm:$0x3]
        %v307 = vld [vmem:[%s176 + $0xfa] sm:$0x3]
        %v308 = vld [vmem:[%s176 + $0xfc] sm:$0x3]
        %v309 = vld [vmem:[%s176 + $0xfe] sm:$0x3]
        %vm310 = vcmask 25600
        %v311 = vsel %vm310, %v182, -inf
        %v312 = vrot.slane %v311, 4
        %v313 = vmax.f32 %v311, %v312
        %v314 = vrot.slane %v313, 2
        %v315 = vmax.f32 %v313, %v314
        %v316 = vrot.slane %v315, 1
        %v317 = vmax.f32 %v315, %v316
        %v318 = vsel %vm310, %v183, -inf
        %v319 = vrot.slane %v318, 4
        %v320 = vmax.f32 %v318, %v319
        %v321 = vrot.slane %v320, 2
        %v322 = vmax.f32 %v320, %v321
        %v323 = vrot.slane %v322, 1
        %v324 = vmax.f32 %v322, %v323
        %v325 = vsel %vm310, %v184, -inf
        %v326 = vrot.slane %v325, 4
        %v327 = vmax.f32 %v325, %v326
        %v328 = vrot.slane %v327, 2
        %v329 = vmax.f32 %v327, %v328
        %v330 = vrot.slane %v329, 1
        %v331 = vmax.f32 %v329, %v330
        %v332 = vsel %vm310, %v185, -inf
        %v333 = vrot.slane %v332, 4
        %v334 = vmax.f32 %v332, %v333
        %v335 = vrot.slane %v334, 2
        %v336 = vmax.f32 %v334, %v335
        %v337 = vrot.slane %v336, 1
        %v338 = vmax.f32 %v336, %v337
        %v339 = vsel %vm310, %v186, -inf
        %v340 = vrot.slane %v339, 4
        %v341 = vmax.f32 %v339, %v340
        %v342 = vrot.slane %v341, 2
        %v343 = vmax.f32 %v341, %v342
        %v344 = vrot.slane %v343, 1
        %v345 = vmax.f32 %v343, %v344
        %v346 = vsel %vm310, %v187, -inf
        %v347 = vrot.slane %v346, 4
        %v348 = vmax.f32 %v346, %v347
        %v349 = vrot.slane %v348, 2
        %v350 = vmax.f32 %v348, %v349
        %v351 = vrot.slane %v350, 1
        %v352 = vmax.f32 %v350, %v351
        %v353 = vsel %vm310, %v188, -inf
        %v354 = vrot.slane %v353, 4
        %v355 = vmax.f32 %v353, %v354
        %v356 = vrot.slane %v355, 2
        %v357 = vmax.f32 %v355, %v356
        %v358 = vrot.slane %v357, 1
        %v359 = vmax.f32 %v357, %v358
        %v360 = vsel %vm310, %v189, -inf
        %v361 = vrot.slane %v360, 4
        %v362 = vmax.f32 %v360, %v361
        %v363 = vrot.slane %v362, 2
        %v364 = vmax.f32 %v362, %v363
        %v365 = vrot.slane %v364, 1
        %v366 = vmax.f32 %v364, %v365
        %v367 = vsel %vm310, %v190, -inf
        %v368 = vrot.slane %v367, 4
        %v369 = vmax.f32 %v367, %v368
        %v370 = vrot.slane %v369, 2
        %v371 = vmax.f32 %v369, %v370
        %v372 = vrot.slane %v371, 1
        %v373 = vmax.f32 %v371, %v372
        %v374 = vsel %vm310, %v191, -inf
        %v375 = vrot.slane %v374, 4
        %v376 = vmax.f32 %v374, %v375
        %v377 = vrot.slane %v376, 2
        %v378 = vmax.f32 %v376, %v377
        %v379 = vrot.slane %v378, 1
        %v380 = vmax.f32 %v378, %v379
        %v381 = vsel %vm310, %v192, -inf
        %v382 = vrot.slane %v381, 4
        %v383 = vmax.f32 %v381, %v382
        %v384 = vrot.slane %v383, 2
        %v385 = vmax.f32 %v383, %v384
        %v386 = vrot.slane %v385, 1
        %v387 = vmax.f32 %v385, %v386
        %v388 = vsel %vm310, %v193, -inf
        %v389 = vrot.slane %v388, 4
        %v390 = vmax.f32 %v388, %v389
        %v391 = vrot.slane %v390, 2
        %v392 = vmax.f32 %v390, %v391
        %v393 = vrot.slane %v392, 1
        %v394 = vmax.f32 %v392, %v393
        %v395 = vsel %vm310, %v194, -inf
        %v396 = vrot.slane %v395, 4
        %v397 = vmax.f32 %v395, %v396
        %v398 = vrot.slane %v397, 2
        %v399 = vmax.f32 %v397, %v398
        %v400 = vrot.slane %v399, 1
        %v401 = vmax.f32 %v399, %v400
        %v402 = vsel %vm310, %v195, -inf
        %v403 = vrot.slane %v402, 4
        %v404 = vmax.f32 %v402, %v403
        %v405 = vrot.slane %v404, 2
        %v406 = vmax.f32 %v404, %v405
        %v407 = vrot.slane %v406, 1
        %v408 = vmax.f32 %v406, %v407
        %v409 = vsel %vm310, %v196, -inf
        %v410 = vrot.slane %v409, 4
        %v411 = vmax.f32 %v409, %v410
        %v412 = vrot.slane %v411, 2
        %v413 = vmax.f32 %v411, %v412
        %v414 = vrot.slane %v413, 1
        %v415 = vmax.f32 %v413, %v414
        %v416 = vsel %vm310, %v197, -inf
        %v417 = vrot.slane %v416, 4
        %v418 = vmax.f32 %v416, %v417
        %v419 = vrot.slane %v418, 2
        %v420 = vmax.f32 %v418, %v419
        %v421 = vrot.slane %v420, 1
        %v422 = vmax.f32 %v420, %v421
        %v423 = vsel %vm310, %v198, -inf
        %v424 = vrot.slane %v423, 4
        %v425 = vmax.f32 %v423, %v424
        %v426 = vrot.slane %v425, 2
        %v427 = vmax.f32 %v425, %v426
        %v428 = vrot.slane %v427, 1
        %v429 = vmax.f32 %v427, %v428
        %v430 = vsel %vm310, %v199, -inf
        %v431 = vrot.slane %v430, 4
        %v432 = vmax.f32 %v430, %v431
        %v433 = vrot.slane %v432, 2
        %v434 = vmax.f32 %v432, %v433
        %v435 = vrot.slane %v434, 1
        %v436 = vmax.f32 %v434, %v435
        %v437 = vsel %vm310, %v200, -inf
        %v438 = vrot.slane %v437, 4
        %v439 = vmax.f32 %v437, %v438
        %v440 = vrot.slane %v439, 2
        %v441 = vmax.f32 %v439, %v440
        %v442 = vrot.slane %v441, 1
        %v443 = vmax.f32 %v441, %v442
        %v444 = vsel %vm310, %v201, -inf
        %v445 = vrot.slane %v444, 4
        %v446 = vmax.f32 %v444, %v445
        %v447 = vrot.slane %v446, 2
        %v448 = vmax.f32 %v446, %v447
        %v449 = vrot.slane %v448, 1
        %v450 = vmax.f32 %v448, %v449
        %v451 = vsel %vm310, %v202, -inf
        %v452 = vrot.slane %v451, 4
        %v453 = vmax.f32 %v451, %v452
        %v454 = vrot.slane %v453, 2
        %v455 = vmax.f32 %v453, %v454
        %v456 = vrot.slane %v455, 1
        %v457 = vmax.f32 %v455, %v456
        %v458 = vsel %vm310, %v203, -inf
        %v459 = vrot.slane %v458, 4
        %v460 = vmax.f32 %v458, %v459
        %v461 = vrot.slane %v460, 2
        %v462 = vmax.f32 %v460, %v461
        %v463 = vrot.slane %v462, 1
        %v464 = vmax.f32 %v462, %v463
        %v465 = vsel %vm310, %v204, -inf
        %v466 = vrot.slane %v465, 4
        %v467 = vmax.f32 %v465, %v466
        %v468 = vrot.slane %v467, 2
        %v469 = vmax.f32 %v467, %v468
        %v470 = vrot.slane %v469, 1
        %v471 = vmax.f32 %v469, %v470
        %v472 = vsel %vm310, %v205, -inf
        %v473 = vrot.slane %v472, 4
        %v474 = vmax.f32 %v472, %v473
        %v475 = vrot.slane %v474, 2
        %v476 = vmax.f32 %v474, %v475
        %v477 = vrot.slane %v476, 1
        %v478 = vmax.f32 %v476, %v477
        %v479 = vsel %vm310, %v206, -inf
        %v480 = vrot.slane %v479, 4
        %v481 = vmax.f32 %v479, %v480
        %v482 = vrot.slane %v481, 2
        %v483 = vmax.f32 %v481, %v482
        %v484 = vrot.slane %v483, 1
        %v485 = vmax.f32 %v483, %v484
        %v486 = vsel %vm310, %v207, -inf
        %v487 = vrot.slane %v486, 4
        %v488 = vmax.f32 %v486, %v487
        %v489 = vrot.slane %v488, 2
        %v490 = vmax.f32 %v488, %v489
        %v491 = vrot.slane %v490, 1
        %v492 = vmax.f32 %v490, %v491
        %v493 = vsel %vm310, %v208, -inf
        %v494 = vrot.slane %v493, 4
        %v495 = vmax.f32 %v493, %v494
        %v496 = vrot.slane %v495, 2
        %v497 = vmax.f32 %v495, %v496
        %v498 = vrot.slane %v497, 1
        %v499 = vmax.f32 %v497, %v498
        %v500 = vsel %vm310, %v209, -inf
        %v501 = vrot.slane %v500, 4
        %v502 = vmax.f32 %v500, %v501
        %v503 = vrot.slane %v502, 2
        %v504 = vmax.f32 %v502, %v503
        %v505 = vrot.slane %v504, 1
        %v506 = vmax.f32 %v504, %v505
        %v507 = vsel %vm310, %v210, -inf
        %v508 = vrot.slane %v507, 4
        %v509 = vmax.f32 %v507, %v508
        %v510 = vrot.slane %v509, 2
        %v511 = vmax.f32 %v509, %v510
        %v512 = vrot.slane %v511, 1
        %v513 = vmax.f32 %v511, %v512
        %v514 = vsel %vm310, %v211, -inf
        %v515 = vrot.slane %v514, 4
        %v516 = vmax.f32 %v514, %v515
        %v517 = vrot.slane %v516, 2
        %v518 = vmax.f32 %v516, %v517
        %v519 = vrot.slane %v518, 1
        %v520 = vmax.f32 %v518, %v519
        %v521 = vsel %vm310, %v212, -inf
        %v522 = vrot.slane %v521, 4
        %v523 = vmax.f32 %v521, %v522
        %v524 = vrot.slane %v523, 2
        %v525 = vmax.f32 %v523, %v524
        %v526 = vrot.slane %v525, 1
        %v527 = vmax.f32 %v525, %v526
        %v528 = vsel %vm310, %v213, -inf
        %v529 = vrot.slane %v528, 4
        %v530 = vmax.f32 %v528, %v529
        %v531 = vrot.slane %v530, 2
        %v532 = vmax.f32 %v530, %v531
        %v533 = vrot.slane %v532, 1
        %v534 = vmax.f32 %v532, %v533
        %v535 = vsel %vm310, %v214, -inf
        %v536 = vrot.slane %v535, 4
        %v537 = vmax.f32 %v535, %v536
        %v538 = vrot.slane %v537, 2
        %v539 = vmax.f32 %v537, %v538
        %v540 = vrot.slane %v539, 1
        %v541 = vmax.f32 %v539, %v540
        %v542 = vsel %vm310, %v215, -inf
        %v543 = vrot.slane %v542, 4
        %v544 = vmax.f32 %v542, %v543
        %v545 = vrot.slane %v544, 2
        %v546 = vmax.f32 %v544, %v545
        %v547 = vrot.slane %v546, 1
        %v548 = vmax.f32 %v546, %v547
        %v549 = vsel %vm310, %v216, -inf
        %v550 = vrot.slane %v549, 4
        %v551 = vmax.f32 %v549, %v550
        %v552 = vrot.slane %v551, 2
        %v553 = vmax.f32 %v551, %v552
        %v554 = vrot.slane %v553, 1
        %v555 = vmax.f32 %v553, %v554
        %v556 = vsel %vm310, %v217, -inf
        %v557 = vrot.slane %v556, 4
        %v558 = vmax.f32 %v556, %v557
        %v559 = vrot.slane %v558, 2
        %v560 = vmax.f32 %v558, %v559
        %v561 = vrot.slane %v560, 1
        %v562 = vmax.f32 %v560, %v561
        %v563 = vsel %vm310, %v218, -inf
        %v564 = vrot.slane %v563, 4
        %v565 = vmax.f32 %v563, %v564
        %v566 = vrot.slane %v565, 2
        %v567 = vmax.f32 %v565, %v566
        %v568 = vrot.slane %v567, 1
        %v569 = vmax.f32 %v567, %v568
        %v570 = vsel %vm310, %v219, -inf
        %v571 = vrot.slane %v570, 4
        %v572 = vmax.f32 %v570, %v571
        %v573 = vrot.slane %v572, 2
        %v574 = vmax.f32 %v572, %v573
        %v575 = vrot.slane %v574, 1
        %v576 = vmax.f32 %v574, %v575
        %v577 = vsel %vm310, %v220, -inf
        %v578 = vrot.slane %v577, 4
        %v579 = vmax.f32 %v577, %v578
        %v580 = vrot.slane %v579, 2
        %v581 = vmax.f32 %v579, %v580
        %v582 = vrot.slane %v581, 1
        %v583 = vmax.f32 %v581, %v582
        %v584 = vsel %vm310, %v221, -inf
        %v585 = vrot.slane %v584, 4
        %v586 = vmax.f32 %v584, %v585
        %v587 = vrot.slane %v586, 2
        %v588 = vmax.f32 %v586, %v587
        %v589 = vrot.slane %v588, 1
        %v590 = vmax.f32 %v588, %v589
        %v591 = vsel %vm310, %v222, -inf
        %v592 = vrot.slane %v591, 4
        %v593 = vmax.f32 %v591, %v592
        %v594 = vrot.slane %v593, 2
        %v595 = vmax.f32 %v593, %v594
        %v596 = vrot.slane %v595, 1
        %v597 = vmax.f32 %v595, %v596
        %v598 = vsel %vm310, %v223, -inf
        %v599 = vrot.slane %v598, 4
        %v600 = vmax.f32 %v598, %v599
        %v601 = vrot.slane %v600, 2
        %v602 = vmax.f32 %v600, %v601
        %v603 = vrot.slane %v602, 1
        %v604 = vmax.f32 %v602, %v603
        %v605 = vsel %vm310, %v224, -inf
        %v606 = vrot.slane %v605, 4
        %v607 = vmax.f32 %v605, %v606
        %v608 = vrot.slane %v607, 2
        %v609 = vmax.f32 %v607, %v608
        %v610 = vrot.slane %v609, 1
        %v611 = vmax.f32 %v609, %v610
        %v612 = vsel %vm310, %v225, -inf
        %v613 = vrot.slane %v612, 4
        %v614 = vmax.f32 %v612, %v613
        %v615 = vrot.slane %v614, 2
        %v616 = vmax.f32 %v614, %v615
        %v617 = vrot.slane %v616, 1
        %v618 = vmax.f32 %v616, %v617
        %v619 = vsel %vm310, %v226, -inf
        %v620 = vrot.slane %v619, 4
        %v621 = vmax.f32 %v619, %v620
        %v622 = vrot.slane %v621, 2
        %v623 = vmax.f32 %v621, %v622
        %v624 = vrot.slane %v623, 1
        %v625 = vmax.f32 %v623, %v624
        %v626 = vsel %vm310, %v227, -inf
        %v627 = vrot.slane %v626, 4
        %v628 = vmax.f32 %v626, %v627
        %v629 = vrot.slane %v628, 2
        %v630 = vmax.f32 %v628, %v629
        %v631 = vrot.slane %v630, 1
        %v632 = vmax.f32 %v630, %v631
        %v633 = vsel %vm310, %v228, -inf
        %v634 = vrot.slane %v633, 4
        %v635 = vmax.f32 %v633, %v634
        %v636 = vrot.slane %v635, 2
        %v637 = vmax.f32 %v635, %v636
        %v638 = vrot.slane %v637, 1
        %v639 = vmax.f32 %v637, %v638
        %v640 = vsel %vm310, %v229, -inf
        %v641 = vrot.slane %v640, 4
        %v642 = vmax.f32 %v640, %v641
        %v643 = vrot.slane %v642, 2
        %v644 = vmax.f32 %v642, %v643
        %v645 = vrot.slane %v644, 1
        %v646 = vmax.f32 %v644, %v645
        %v647 = vsel %vm310, %v230, -inf
        %v648 = vrot.slane %v647, 4
        %v649 = vmax.f32 %v647, %v648
        %v650 = vrot.slane %v649, 2
        %v651 = vmax.f32 %v649, %v650
        %v652 = vrot.slane %v651, 1
        %v653 = vmax.f32 %v651, %v652
        %v654 = vsel %vm310, %v231, -inf
        %v655 = vrot.slane %v654, 4
        %v656 = vmax.f32 %v654, %v655
        %v657 = vrot.slane %v656, 2
        %v658 = vmax.f32 %v656, %v657
        %v659 = vrot.slane %v658, 1
        %v660 = vmax.f32 %v658, %v659
        %v661 = vsel %vm310, %v232, -inf
        %v662 = vrot.slane %v661, 4
        %v663 = vmax.f32 %v661, %v662
        %v664 = vrot.slane %v663, 2
        %v665 = vmax.f32 %v663, %v664
        %v666 = vrot.slane %v665, 1
        %v667 = vmax.f32 %v665, %v666
        %v668 = vsel %vm310, %v233, -inf
        %v669 = vrot.slane %v668, 4
        %v670 = vmax.f32 %v668, %v669
        %v671 = vrot.slane %v670, 2
        %v672 = vmax.f32 %v670, %v671
        %v673 = vrot.slane %v672, 1
        %v674 = vmax.f32 %v672, %v673
        %v675 = vsel %vm310, %v234, -inf
        %v676 = vrot.slane %v675, 4
        %v677 = vmax.f32 %v675, %v676
        %v678 = vrot.slane %v677, 2
        %v679 = vmax.f32 %v677, %v678
        %v680 = vrot.slane %v679, 1
        %v681 = vmax.f32 %v679, %v680
        %v682 = vsel %vm310, %v235, -inf
        %v683 = vrot.slane %v682, 4
        %v684 = vmax.f32 %v682, %v683
        %v685 = vrot.slane %v684, 2
        %v686 = vmax.f32 %v684, %v685
        %v687 = vrot.slane %v686, 1
        %v688 = vmax.f32 %v686, %v687
        %v689 = vsel %vm310, %v236, -inf
        %v690 = vrot.slane %v689, 4
        %v691 = vmax.f32 %v689, %v690
        %v692 = vrot.slane %v691, 2
        %v693 = vmax.f32 %v691, %v692
        %v694 = vrot.slane %v693, 1
        %v695 = vmax.f32 %v693, %v694
        %v696 = vsel %vm310, %v237, -inf
        %v697 = vrot.slane %v696, 4
        %v698 = vmax.f32 %v696, %v697
        %v699 = vrot.slane %v698, 2
        %v700 = vmax.f32 %v698, %v699
        %v701 = vrot.slane %v700, 1
        %v702 = vmax.f32 %v700, %v701
        %v703 = vsel %vm310, %v238, -inf
        %v704 = vrot.slane %v703, 4
        %v705 = vmax.f32 %v703, %v704
        %v706 = vrot.slane %v705, 2
        %v707 = vmax.f32 %v705, %v706
        %v708 = vrot.slane %v707, 1
        %v709 = vmax.f32 %v707, %v708
        %v710 = vsel %vm310, %v239, -inf
        %v711 = vrot.slane %v710, 4
        %v712 = vmax.f32 %v710, %v711
        %v713 = vrot.slane %v712, 2
        %v714 = vmax.f32 %v712, %v713
        %v715 = vrot.slane %v714, 1
        %v716 = vmax.f32 %v714, %v715
        %v717 = vsel %vm310, %v240, -inf
        %v718 = vrot.slane %v717, 4
        %v719 = vmax.f32 %v717, %v718
        %v720 = vrot.slane %v719, 2
        %v721 = vmax.f32 %v719, %v720
        %v722 = vrot.slane %v721, 1
        %v723 = vmax.f32 %v721, %v722
        %v724 = vsel %vm310, %v241, -inf
        %v725 = vrot.slane %v724, 4
        %v726 = vmax.f32 %v724, %v725
        %v727 = vrot.slane %v726, 2
        %v728 = vmax.f32 %v726, %v727
        %v729 = vrot.slane %v728, 1
        %v730 = vmax.f32 %v728, %v729
        %v731 = vsel %vm310, %v242, -inf
        %v732 = vrot.slane %v731, 4
        %v733 = vmax.f32 %v731, %v732
        %v734 = vrot.slane %v733, 2
        %v735 = vmax.f32 %v733, %v734
        %v736 = vrot.slane %v735, 1
        %v737 = vmax.f32 %v735, %v736
        %v738 = vsel %vm310, %v243, -inf
        %v739 = vrot.slane %v738, 4
        %v740 = vmax.f32 %v738, %v739
        %v741 = vrot.slane %v740, 2
        %v742 = vmax.f32 %v740, %v741
        %v743 = vrot.slane %v742, 1
        %v744 = vmax.f32 %v742, %v743
        %v745 = vsel %vm310, %v244, -inf
        %v746 = vrot.slane %v745, 4
        %v747 = vmax.f32 %v745, %v746
        %v748 = vrot.slane %v747, 2
        %v749 = vmax.f32 %v747, %v748
        %v750 = vrot.slane %v749, 1
        %v751 = vmax.f32 %v749, %v750
        %v752 = vsel %vm310, %v245, -inf
        %v753 = vrot.slane %v752, 4
        %v754 = vmax.f32 %v752, %v753
        %v755 = vrot.slane %v754, 2
        %v756 = vmax.f32 %v754, %v755
        %v757 = vrot.slane %v756, 1
        %v758 = vmax.f32 %v756, %v757
        %v759 = vsel %vm310, %v246, -inf
        %v760 = vrot.slane %v759, 4
        %v761 = vmax.f32 %v759, %v760
        %v762 = vrot.slane %v761, 2
        %v763 = vmax.f32 %v761, %v762
        %v764 = vrot.slane %v763, 1
        %v765 = vmax.f32 %v763, %v764
        %v766 = vsel %vm310, %v247, -inf
        %v767 = vrot.slane %v766, 4
        %v768 = vmax.f32 %v766, %v767
        %v769 = vrot.slane %v768, 2
        %v770 = vmax.f32 %v768, %v769
        %v771 = vrot.slane %v770, 1
        %v772 = vmax.f32 %v770, %v771
        %v773 = vsel %vm310, %v248, -inf
        %v774 = vrot.slane %v773, 4
        %v775 = vmax.f32 %v773, %v774
        %v776 = vrot.slane %v775, 2
        %v777 = vmax.f32 %v775, %v776
        %v778 = vrot.slane %v777, 1
        %v779 = vmax.f32 %v777, %v778
        %v780 = vsel %vm310, %v249, -inf
        %v781 = vrot.slane %v780, 4
        %v782 = vmax.f32 %v780, %v781
        %v783 = vrot.slane %v782, 2
        %v784 = vmax.f32 %v782, %v783
        %v785 = vrot.slane %v784, 1
        %v786 = vmax.f32 %v784, %v785
        %v787 = vsel %vm310, %v250, -inf
        %v788 = vrot.slane %v787, 4
        %v789 = vmax.f32 %v787, %v788
        %v790 = vrot.slane %v789, 2
        %v791 = vmax.f32 %v789, %v790
        %v792 = vrot.slane %v791, 1
        %v793 = vmax.f32 %v791, %v792
        %v794 = vsel %vm310, %v251, -inf
        %v795 = vrot.slane %v794, 4
        %v796 = vmax.f32 %v794, %v795
        %v797 = vrot.slane %v796, 2
        %v798 = vmax.f32 %v796, %v797
        %v799 = vrot.slane %v798, 1
        %v800 = vmax.f32 %v798, %v799
        %v801 = vsel %vm310, %v252, -inf
        %v802 = vrot.slane %v801, 4
        %v803 = vmax.f32 %v801, %v802
        %v804 = vrot.slane %v803, 2
        %v805 = vmax.f32 %v803, %v804
        %v806 = vrot.slane %v805, 1
        %v807 = vmax.f32 %v805, %v806
        %v808 = vsel %vm310, %v253, -inf
        %v809 = vrot.slane %v808, 4
        %v810 = vmax.f32 %v808, %v809
        %v811 = vrot.slane %v810, 2
        %v812 = vmax.f32 %v810, %v811
        %v813 = vrot.slane %v812, 1
        %v814 = vmax.f32 %v812, %v813
        %v815 = vsel %vm310, %v254, -inf
        %v816 = vrot.slane %v815, 4
        %v817 = vmax.f32 %v815, %v816
        %v818 = vrot.slane %v817, 2
        %v819 = vmax.f32 %v817, %v818
        %v820 = vrot.slane %v819, 1
        %v821 = vmax.f32 %v819, %v820
        %v822 = vsel %vm310, %v255, -inf
        %v823 = vrot.slane %v822, 4
        %v824 = vmax.f32 %v822, %v823
        %v825 = vrot.slane %v824, 2
        %v826 = vmax.f32 %v824, %v825
        %v827 = vrot.slane %v826, 1
        %v828 = vmax.f32 %v826, %v827
        %v829 = vsel %vm310, %v256, -inf
        %v830 = vrot.slane %v829, 4
        %v831 = vmax.f32 %v829, %v830
        %v832 = vrot.slane %v831, 2
        %v833 = vmax.f32 %v831, %v832
        %v834 = vrot.slane %v833, 1
        %v835 = vmax.f32 %v833, %v834
        %v836 = vsel %vm310, %v257, -inf
        %v837 = vrot.slane %v836, 4
        %v838 = vmax.f32 %v836, %v837
        %v839 = vrot.slane %v838, 2
        %v840 = vmax.f32 %v838, %v839
        %v841 = vrot.slane %v840, 1
        %v842 = vmax.f32 %v840, %v841
        %v843 = vsel %vm310, %v258, -inf
        %v844 = vrot.slane %v843, 4
        %v845 = vmax.f32 %v843, %v844
        %v846 = vrot.slane %v845, 2
        %v847 = vmax.f32 %v845, %v846
        %v848 = vrot.slane %v847, 1
        %v849 = vmax.f32 %v847, %v848
        %v850 = vsel %vm310, %v259, -inf
        %v851 = vrot.slane %v850, 4
        %v852 = vmax.f32 %v850, %v851
        %v853 = vrot.slane %v852, 2
        %v854 = vmax.f32 %v852, %v853
        %v855 = vrot.slane %v854, 1
        %v856 = vmax.f32 %v854, %v855
        %v857 = vsel %vm310, %v260, -inf
        %v858 = vrot.slane %v857, 4
        %v859 = vmax.f32 %v857, %v858
        %v860 = vrot.slane %v859, 2
        %v861 = vmax.f32 %v859, %v860
        %v862 = vrot.slane %v861, 1
        %v863 = vmax.f32 %v861, %v862
        %v864 = vsel %vm310, %v261, -inf
        %v865 = vrot.slane %v864, 4
        %v866 = vmax.f32 %v864, %v865
        %v867 = vrot.slane %v866, 2
        %v868 = vmax.f32 %v866, %v867
        %v869 = vrot.slane %v868, 1
        %v870 = vmax.f32 %v868, %v869
        %v871 = vsel %vm310, %v262, -inf
        %v872 = vrot.slane %v871, 4
        %v873 = vmax.f32 %v871, %v872
        %v874 = vrot.slane %v873, 2
        %v875 = vmax.f32 %v873, %v874
        %v876 = vrot.slane %v875, 1
        %v877 = vmax.f32 %v875, %v876
        %v878 = vsel %vm310, %v263, -inf
        %v879 = vrot.slane %v878, 4
        %v880 = vmax.f32 %v878, %v879
        %v881 = vrot.slane %v880, 2
        %v882 = vmax.f32 %v880, %v881
        %v883 = vrot.slane %v882, 1
        %v884 = vmax.f32 %v882, %v883
        %v885 = vsel %vm310, %v264, -inf
        %v886 = vrot.slane %v885, 4
        %v887 = vmax.f32 %v885, %v886
        %v888 = vrot.slane %v887, 2
        %v889 = vmax.f32 %v887, %v888
        %v890 = vrot.slane %v889, 1
        %v891 = vmax.f32 %v889, %v890
        %v892 = vsel %vm310, %v265, -inf
        %v893 = vrot.slane %v892, 4
        %v894 = vmax.f32 %v892, %v893
        %v895 = vrot.slane %v894, 2
        %v896 = vmax.f32 %v894, %v895
        %v897 = vrot.slane %v896, 1
        %v898 = vmax.f32 %v896, %v897
        %v899 = vsel %vm310, %v266, -inf
        %v900 = vrot.slane %v899, 4
        %v901 = vmax.f32 %v899, %v900
        %v902 = vrot.slane %v901, 2
        %v903 = vmax.f32 %v901, %v902
        %v904 = vrot.slane %v903, 1
        %v905 = vmax.f32 %v903, %v904
        %v906 = vsel %vm310, %v267, -inf
        %v907 = vrot.slane %v906, 4
        %v908 = vmax.f32 %v906, %v907
        %v909 = vrot.slane %v908, 2
        %v910 = vmax.f32 %v908, %v909
        %v911 = vrot.slane %v910, 1
        %v912 = vmax.f32 %v910, %v911
        %v913 = vsel %vm310, %v268, -inf
        %v914 = vrot.slane %v913, 4
        %v915 = vmax.f32 %v913, %v914
        %v916 = vrot.slane %v915, 2
        %v917 = vmax.f32 %v915, %v916
        %v918 = vrot.slane %v917, 1
        %v919 = vmax.f32 %v917, %v918
        %v920 = vsel %vm310, %v269, -inf
        %v921 = vrot.slane %v920, 4
        %v922 = vmax.f32 %v920, %v921
        %v923 = vrot.slane %v922, 2
        %v924 = vmax.f32 %v922, %v923
        %v925 = vrot.slane %v924, 1
        %v926 = vmax.f32 %v924, %v925
        %v927 = vsel %vm310, %v270, -inf
        %v928 = vrot.slane %v927, 4
        %v929 = vmax.f32 %v927, %v928
        %v930 = vrot.slane %v929, 2
        %v931 = vmax.f32 %v929, %v930
        %v932 = vrot.slane %v931, 1
        %v933 = vmax.f32 %v931, %v932
        %v934 = vsel %vm310, %v271, -inf
        %v935 = vrot.slane %v934, 4
        %v936 = vmax.f32 %v934, %v935
        %v937 = vrot.slane %v936, 2
        %v938 = vmax.f32 %v936, %v937
        %v939 = vrot.slane %v938, 1
        %v940 = vmax.f32 %v938, %v939
        %v941 = vsel %vm310, %v272, -inf
        %v942 = vrot.slane %v941, 4
        %v943 = vmax.f32 %v941, %v942
        %v944 = vrot.slane %v943, 2
        %v945 = vmax.f32 %v943, %v944
        %v946 = vrot.slane %v945, 1
        %v947 = vmax.f32 %v945, %v946
        %v948 = vsel %vm310, %v273, -inf
        %v949 = vrot.slane %v948, 4
        %v950 = vmax.f32 %v948, %v949
        %v951 = vrot.slane %v950, 2
        %v952 = vmax.f32 %v950, %v951
        %v953 = vrot.slane %v952, 1
        %v954 = vmax.f32 %v952, %v953
        %v955 = vsel %vm310, %v274, -inf
        %v956 = vrot.slane %v955, 4
        %v957 = vmax.f32 %v955, %v956
        %v958 = vrot.slane %v957, 2
        %v959 = vmax.f32 %v957, %v958
        %v960 = vrot.slane %v959, 1
        %v961 = vmax.f32 %v959, %v960
        %v962 = vsel %vm310, %v275, -inf
        %v963 = vrot.slane %v962, 4
        %v964 = vmax.f32 %v962, %v963
        %v965 = vrot.slane %v964, 2
        %v966 = vmax.f32 %v964, %v965
        %v967 = vrot.slane %v966, 1
        %v968 = vmax.f32 %v966, %v967
        %v969 = vsel %vm310, %v276, -inf
        %v970 = vrot.slane %v969, 4
        %v971 = vmax.f32 %v969, %v970
        %v972 = vrot.slane %v971, 2
        %v973 = vmax.f32 %v971, %v972
        %v974 = vrot.slane %v973, 1
        %v975 = vmax.f32 %v973, %v974
        %v976 = vsel %vm310, %v277, -inf
        %v977 = vrot.slane %v976, 4
        %v978 = vmax.f32 %v976, %v977
        %v979 = vrot.slane %v978, 2
        %v980 = vmax.f32 %v978, %v979
        %v981 = vrot.slane %v980, 1
        %v982 = vmax.f32 %v980, %v981
        %v983 = vsel %vm310, %v278, -inf
        %v984 = vrot.slane %v983, 4
        %v985 = vmax.f32 %v983, %v984
        %v986 = vrot.slane %v985, 2
        %v987 = vmax.f32 %v985, %v986
        %v988 = vrot.slane %v987, 1
        %v989 = vmax.f32 %v987, %v988
        %v990 = vsel %vm310, %v279, -inf
        %v991 = vrot.slane %v990, 4
        %v992 = vmax.f32 %v990, %v991
        %v993 = vrot.slane %v992, 2
        %v994 = vmax.f32 %v992, %v993
        %v995 = vrot.slane %v994, 1
        %v996 = vmax.f32 %v994, %v995
        %v997 = vsel %vm310, %v280, -inf
        %v998 = vrot.slane %v997, 4
        %v999 = vmax.f32 %v997, %v998
        %v1000 = vrot.slane %v999, 2
        %v1001 = vmax.f32 %v999, %v1000
        %v1002 = vrot.slane %v1001, 1
        %v1003 = vmax.f32 %v1001, %v1002
        %v1004 = vsel %vm310, %v281, -inf
        %v1005 = vrot.slane %v1004, 4
        %v1006 = vmax.f32 %v1004, %v1005
        %v1007 = vrot.slane %v1006, 2
        %v1008 = vmax.f32 %v1006, %v1007
        %v1009 = vrot.slane %v1008, 1
        %v1010 = vmax.f32 %v1008, %v1009
        %v1011 = vsel %vm310, %v282, -inf
        %v1012 = vrot.slane %v1011, 4
        %v1013 = vmax.f32 %v1011, %v1012
        %v1014 = vrot.slane %v1013, 2
        %v1015 = vmax.f32 %v1013, %v1014
        %v1016 = vrot.slane %v1015, 1
        %v1017 = vmax.f32 %v1015, %v1016
        %v1018 = vsel %vm310, %v283, -inf
        %v1019 = vrot.slane %v1018, 4
        %v1020 = vmax.f32 %v1018, %v1019
        %v1021 = vrot.slane %v1020, 2
        %v1022 = vmax.f32 %v1020, %v1021
        %v1023 = vrot.slane %v1022, 1
        %v1024 = vmax.f32 %v1022, %v1023
        %v1025 = vsel %vm310, %v284, -inf
        %v1026 = vrot.slane %v1025, 4
        %v1027 = vmax.f32 %v1025, %v1026
        %v1028 = vrot.slane %v1027, 2
        %v1029 = vmax.f32 %v1027, %v1028
        %v1030 = vrot.slane %v1029, 1
        %v1031 = vmax.f32 %v1029, %v1030
        %v1032 = vsel %vm310, %v285, -inf
        %v1033 = vrot.slane %v1032, 4
        %v1034 = vmax.f32 %v1032, %v1033
        %v1035 = vrot.slane %v1034, 2
        %v1036 = vmax.f32 %v1034, %v1035
        %v1037 = vrot.slane %v1036, 1
        %v1038 = vmax.f32 %v1036, %v1037
        %v1039 = vsel %vm310, %v286, -inf
        %v1040 = vrot.slane %v1039, 4
        %v1041 = vmax.f32 %v1039, %v1040
        %v1042 = vrot.slane %v1041, 2
        %v1043 = vmax.f32 %v1041, %v1042
        %v1044 = vrot.slane %v1043, 1
        %v1045 = vmax.f32 %v1043, %v1044
        %v1046 = vsel %vm310, %v287, -inf
        %v1047 = vrot.slane %v1046, 4
        %v1048 = vmax.f32 %v1046, %v1047
        %v1049 = vrot.slane %v1048, 2
        %v1050 = vmax.f32 %v1048, %v1049
        %v1051 = vrot.slane %v1050, 1
        %v1052 = vmax.f32 %v1050, %v1051
        %v1053 = vsel %vm310, %v288, -inf
        %v1054 = vrot.slane %v1053, 4
        %v1055 = vmax.f32 %v1053, %v1054
        %v1056 = vrot.slane %v1055, 2
        %v1057 = vmax.f32 %v1055, %v1056
        %v1058 = vrot.slane %v1057, 1
        %v1059 = vmax.f32 %v1057, %v1058
        %v1060 = vsel %vm310, %v289, -inf
        %v1061 = vrot.slane %v1060, 4
        %v1062 = vmax.f32 %v1060, %v1061
        %v1063 = vrot.slane %v1062, 2
        %v1064 = vmax.f32 %v1062, %v1063
        %v1065 = vrot.slane %v1064, 1
        %v1066 = vmax.f32 %v1064, %v1065
        %v1067 = vsel %vm310, %v290, -inf
        %v1068 = vrot.slane %v1067, 4
        %v1069 = vmax.f32 %v1067, %v1068
        %v1070 = vrot.slane %v1069, 2
        %v1071 = vmax.f32 %v1069, %v1070
        %v1072 = vrot.slane %v1071, 1
        %v1073 = vmax.f32 %v1071, %v1072
        %v1074 = vsel %vm310, %v291, -inf
        %v1075 = vrot.slane %v1074, 4
        %v1076 = vmax.f32 %v1074, %v1075
        %v1077 = vrot.slane %v1076, 2
        %v1078 = vmax.f32 %v1076, %v1077
        %v1079 = vrot.slane %v1078, 1
        %v1080 = vmax.f32 %v1078, %v1079
        %v1081 = vsel %vm310, %v292, -inf
        %v1082 = vrot.slane %v1081, 4
        %v1083 = vmax.f32 %v1081, %v1082
        %v1084 = vrot.slane %v1083, 2
        %v1085 = vmax.f32 %v1083, %v1084
        %v1086 = vrot.slane %v1085, 1
        %v1087 = vmax.f32 %v1085, %v1086
        %v1088 = vsel %vm310, %v293, -inf
        %v1089 = vrot.slane %v1088, 4
        %v1090 = vmax.f32 %v1088, %v1089
        %v1091 = vrot.slane %v1090, 2
        %v1092 = vmax.f32 %v1090, %v1091
        %v1093 = vrot.slane %v1092, 1
        %v1094 = vmax.f32 %v1092, %v1093
        %v1095 = vsel %vm310, %v294, -inf
        %v1096 = vrot.slane %v1095, 4
        %v1097 = vmax.f32 %v1095, %v1096
        %v1098 = vrot.slane %v1097, 2
        %v1099 = vmax.f32 %v1097, %v1098
        %v1100 = vrot.slane %v1099, 1
        %v1101 = vmax.f32 %v1099, %v1100
        %v1102 = vsel %vm310, %v295, -inf
        %v1103 = vrot.slane %v1102, 4
        %v1104 = vmax.f32 %v1102, %v1103
        %v1105 = vrot.slane %v1104, 2
        %v1106 = vmax.f32 %v1104, %v1105
        %v1107 = vrot.slane %v1106, 1
        %v1108 = vmax.f32 %v1106, %v1107
        %v1109 = vsel %vm310, %v296, -inf
        %v1110 = vrot.slane %v1109, 4
        %v1111 = vmax.f32 %v1109, %v1110
        %v1112 = vrot.slane %v1111, 2
        %v1113 = vmax.f32 %v1111, %v1112
        %v1114 = vrot.slane %v1113, 1
        %v1115 = vmax.f32 %v1113, %v1114
        %v1116 = vsel %vm310, %v297, -inf
        %v1117 = vrot.slane %v1116, 4
        %v1118 = vmax.f32 %v1116, %v1117
        %v1119 = vrot.slane %v1118, 2
        %v1120 = vmax.f32 %v1118, %v1119
        %v1121 = vrot.slane %v1120, 1
        %v1122 = vmax.f32 %v1120, %v1121
        %v1123 = vsel %vm310, %v298, -inf
        %v1124 = vrot.slane %v1123, 4
        %v1125 = vmax.f32 %v1123, %v1124
        %v1126 = vrot.slane %v1125, 2
        %v1127 = vmax.f32 %v1125, %v1126
        %v1128 = vrot.slane %v1127, 1
        %v1129 = vmax.f32 %v1127, %v1128
        %v1130 = vsel %vm310, %v299, -inf
        %v1131 = vrot.slane %v1130, 4
        %v1132 = vmax.f32 %v1130, %v1131
        %v1133 = vrot.slane %v1132, 2
        %v1134 = vmax.f32 %v1132, %v1133
        %v1135 = vrot.slane %v1134, 1
        %v1136 = vmax.f32 %v1134, %v1135
        %v1137 = vsel %vm310, %v300, -inf
        %v1138 = vrot.slane %v1137, 4
        %v1139 = vmax.f32 %v1137, %v1138
        %v1140 = vrot.slane %v1139, 2
        %v1141 = vmax.f32 %v1139, %v1140
        %v1142 = vrot.slane %v1141, 1
        %v1143 = vmax.f32 %v1141, %v1142
        %v1144 = vsel %vm310, %v301, -inf
        %v1145 = vrot.slane %v1144, 4
        %v1146 = vmax.f32 %v1144, %v1145
        %v1147 = vrot.slane %v1146, 2
        %v1148 = vmax.f32 %v1146, %v1147
        %v1149 = vrot.slane %v1148, 1
        %v1150 = vmax.f32 %v1148, %v1149
        %v1151 = vsel %vm310, %v302, -inf
        %v1152 = vrot.slane %v1151, 4
        %v1153 = vmax.f32 %v1151, %v1152
        %v1154 = vrot.slane %v1153, 2
        %v1155 = vmax.f32 %v1153, %v1154
        %v1156 = vrot.slane %v1155, 1
        %v1157 = vmax.f32 %v1155, %v1156
        %v1158 = vsel %vm310, %v303, -inf
        %v1159 = vrot.slane %v1158, 4
        %v1160 = vmax.f32 %v1158, %v1159
        %v1161 = vrot.slane %v1160, 2
        %v1162 = vmax.f32 %v1160, %v1161
        %v1163 = vrot.slane %v1162, 1
        %v1164 = vmax.f32 %v1162, %v1163
        %v1165 = vsel %vm310, %v304, -inf
        %v1166 = vrot.slane %v1165, 4
        %v1167 = vmax.f32 %v1165, %v1166
        %v1168 = vrot.slane %v1167, 2
        %v1169 = vmax.f32 %v1167, %v1168
        %v1170 = vrot.slane %v1169, 1
        %v1171 = vmax.f32 %v1169, %v1170
        %v1172 = vsel %vm310, %v305, -inf
        %v1173 = vrot.slane %v1172, 4
        %v1174 = vmax.f32 %v1172, %v1173
        %v1175 = vrot.slane %v1174, 2
        %v1176 = vmax.f32 %v1174, %v1175
        %v1177 = vrot.slane %v1176, 1
        %v1178 = vmax.f32 %v1176, %v1177
        %v1179 = vsel %vm310, %v306, -inf
        %v1180 = vrot.slane %v1179, 4
        %v1181 = vmax.f32 %v1179, %v1180
        %v1182 = vrot.slane %v1181, 2
        %v1183 = vmax.f32 %v1181, %v1182
        %v1184 = vrot.slane %v1183, 1
        %v1185 = vmax.f32 %v1183, %v1184
        %v1186 = vsel %vm310, %v307, -inf
        %v1187 = vrot.slane %v1186, 4
        %v1188 = vmax.f32 %v1186, %v1187
        %v1189 = vrot.slane %v1188, 2
        %v1190 = vmax.f32 %v1188, %v1189
        %v1191 = vrot.slane %v1190, 1
        %v1192 = vmax.f32 %v1190, %v1191
        %v1193 = vsel %vm310, %v308, -inf
        %v1194 = vrot.slane %v1193, 4
        %v1195 = vmax.f32 %v1193, %v1194
        %v1196 = vrot.slane %v1195, 2
        %v1197 = vmax.f32 %v1195, %v1196
        %v1198 = vrot.slane %v1197, 1
        %v1199 = vmax.f32 %v1197, %v1198
        %v1200 = vsel %vm310, %v309, -inf
        %v1201 = vrot.slane %v1200, 4
        %v1202 = vmax.f32 %v1200, %v1201
        %v1203 = vrot.slane %v1202, 2
        %v1204 = vmax.f32 %v1202, %v1203
        %v1205 = vrot.slane %v1204, 1
        %v1206 = vmax.f32 %v1204, %v1205
        %vm1207 = vcmask 31744
        %v1208 = vsel %vm1207, %v317, -inf
        %v1209 = vsel %vm1207, %v373, -inf
        %v1210 = vmax.f32 %v1208, %v1209
        %v1211 = vsel %vm1207, %v324, -inf
        %v1212 = vsel %vm1207, %v380, -inf
        %v1213 = vmax.f32 %v1211, %v1212
        %v1214 = vsel %vm1207, %v331, -inf
        %v1215 = vsel %vm1207, %v387, -inf
        %v1216 = vmax.f32 %v1214, %v1215
        %v1217 = vsel %vm1207, %v338, -inf
        %v1218 = vsel %vm1207, %v394, -inf
        %v1219 = vmax.f32 %v1217, %v1218
        %v1220 = vsel %vm1207, %v345, -inf
        %v1221 = vsel %vm1207, %v401, -inf
        %v1222 = vmax.f32 %v1220, %v1221
        %v1223 = vsel %vm1207, %v352, -inf
        %v1224 = vsel %vm1207, %v408, -inf
        %v1225 = vmax.f32 %v1223, %v1224
        %v1226 = vsel %vm1207, %v359, -inf
        %v1227 = vsel %vm1207, %v415, -inf
        %v1228 = vmax.f32 %v1226, %v1227
        %v1229 = vsel %vm1207, %v366, -inf
        %v1230 = vsel %vm1207, %v422, -inf
        %v1231 = vmax.f32 %v1229, %v1230
        %v1232 = vsel %vm1207, %v429, -inf
        %v1233 = vsel %vm1207, %v485, -inf
        %v1234 = vmax.f32 %v1232, %v1233
        %v1235 = vsel %vm1207, %v436, -inf
        %v1236 = vsel %vm1207, %v492, -inf
        %v1237 = vmax.f32 %v1235, %v1236
        %v1238 = vsel %vm1207, %v443, -inf
        %v1239 = vsel %vm1207, %v499, -inf
        %v1240 = vmax.f32 %v1238, %v1239
        %v1241 = vsel %vm1207, %v450, -inf
        %v1242 = vsel %vm1207, %v506, -inf
        %v1243 = vmax.f32 %v1241, %v1242
        %v1244 = vsel %vm1207, %v457, -inf
        %v1245 = vsel %vm1207, %v513, -inf
        %v1246 = vmax.f32 %v1244, %v1245
        %v1247 = vsel %vm1207, %v464, -inf
        %v1248 = vsel %vm1207, %v520, -inf
        %v1249 = vmax.f32 %v1247, %v1248
        %v1250 = vsel %vm1207, %v471, -inf
        %v1251 = vsel %vm1207, %v527, -inf
        %v1252 = vmax.f32 %v1250, %v1251
        %v1253 = vsel %vm1207, %v478, -inf
        %v1254 = vsel %vm1207, %v534, -inf
        %v1255 = vmax.f32 %v1253, %v1254
        %v1256 = vsel %vm1207, %v541, -inf
        %v1257 = vsel %vm1207, %v597, -inf
        %v1258 = vmax.f32 %v1256, %v1257
        %v1259 = vsel %vm1207, %v548, -inf
        %v1260 = vsel %vm1207, %v604, -inf
        %v1261 = vmax.f32 %v1259, %v1260
        %v1262 = vsel %vm1207, %v555, -inf
        %v1263 = vsel %vm1207, %v611, -inf
        %v1264 = vmax.f32 %v1262, %v1263
        %v1265 = vsel %vm1207, %v562, -inf
        %v1266 = vsel %vm1207, %v618, -inf
        %v1267 = vmax.f32 %v1265, %v1266
        %v1268 = vsel %vm1207, %v569, -inf
        %v1269 = vsel %vm1207, %v625, -inf
        %v1270 = vmax.f32 %v1268, %v1269
        %v1271 = vsel %vm1207, %v576, -inf
        %v1272 = vsel %vm1207, %v632, -inf
        %v1273 = vmax.f32 %v1271, %v1272
        %v1274 = vsel %vm1207, %v583, -inf
        %v1275 = vsel %vm1207, %v639, -inf
        %v1276 = vmax.f32 %v1274, %v1275
        %v1277 = vsel %vm1207, %v590, -inf
        %v1278 = vsel %vm1207, %v646, -inf
        %v1279 = vmax.f32 %v1277, %v1278
        %v1280 = vsel %vm1207, %v653, -inf
        %v1281 = vsel %vm1207, %v709, -inf
        %v1282 = vmax.f32 %v1280, %v1281
        %v1283 = vsel %vm1207, %v660, -inf
        %v1284 = vsel %vm1207, %v716, -inf
        %v1285 = vmax.f32 %v1283, %v1284
        %v1286 = vsel %vm1207, %v667, -inf
        %v1287 = vsel %vm1207, %v723, -inf
        %v1288 = vmax.f32 %v1286, %v1287
        %v1289 = vsel %vm1207, %v674, -inf
        %v1290 = vsel %vm1207, %v730, -inf
        %v1291 = vmax.f32 %v1289, %v1290
        %v1292 = vsel %vm1207, %v681, -inf
        %v1293 = vsel %vm1207, %v737, -inf
        %v1294 = vmax.f32 %v1292, %v1293
        %v1295 = vsel %vm1207, %v688, -inf
        %v1296 = vsel %vm1207, %v744, -inf
        %v1297 = vmax.f32 %v1295, %v1296
        %v1298 = vsel %vm1207, %v695, -inf
        %v1299 = vsel %vm1207, %v751, -inf
        %v1300 = vmax.f32 %v1298, %v1299
        %v1301 = vsel %vm1207, %v702, -inf
        %v1302 = vsel %vm1207, %v758, -inf
        %v1303 = vmax.f32 %v1301, %v1302
        %v1304 = vsel %vm1207, %v765, -inf
        %v1305 = vsel %vm1207, %v821, -inf
        %v1306 = vmax.f32 %v1304, %v1305
        %v1307 = vsel %vm1207, %v772, -inf
        %v1308 = vsel %vm1207, %v828, -inf
        %v1309 = vmax.f32 %v1307, %v1308
        %v1310 = vsel %vm1207, %v779, -inf
        %v1311 = vsel %vm1207, %v835, -inf
        %v1312 = vmax.f32 %v1310, %v1311
        %v1313 = vsel %vm1207, %v786, -inf
        %v1314 = vsel %vm1207, %v842, -inf
        %v1315 = vmax.f32 %v1313, %v1314
        %v1316 = vsel %vm1207, %v793, -inf
        %v1317 = vsel %vm1207, %v849, -inf
        %v1318 = vmax.f32 %v1316, %v1317
        %v1319 = vsel %vm1207, %v800, -inf
        %v1320 = vsel %vm1207, %v856, -inf
        %v1321 = vmax.f32 %v1319, %v1320
        %v1322 = vsel %vm1207, %v807, -inf
        %v1323 = vsel %vm1207, %v863, -inf
        %v1324 = vmax.f32 %v1322, %v1323
        %v1325 = vsel %vm1207, %v814, -inf
        %v1326 = vsel %vm1207, %v870, -inf
        %v1327 = vmax.f32 %v1325, %v1326
        %v1328 = vsel %vm1207, %v877, -inf
        %v1329 = vsel %vm1207, %v933, -inf
        %v1330 = vmax.f32 %v1328, %v1329
        %v1331 = vsel %vm1207, %v884, -inf
        %v1332 = vsel %vm1207, %v940, -inf
        %v1333 = vmax.f32 %v1331, %v1332
        %v1334 = vsel %vm1207, %v891, -inf
        %v1335 = vsel %vm1207, %v947, -inf
        %v1336 = vmax.f32 %v1334, %v1335
        %v1337 = vsel %vm1207, %v898, -inf
        %v1338 = vsel %vm1207, %v954, -inf
        %v1339 = vmax.f32 %v1337, %v1338
        %v1340 = vsel %vm1207, %v905, -inf
        %v1341 = vsel %vm1207, %v961, -inf
        %v1342 = vmax.f32 %v1340, %v1341
        %v1343 = vsel %vm1207, %v912, -inf
        %v1344 = vsel %vm1207, %v968, -inf
        %v1345 = vmax.f32 %v1343, %v1344
        %v1346 = vsel %vm1207, %v919, -inf
        %v1347 = vsel %vm1207, %v975, -inf
        %v1348 = vmax.f32 %v1346, %v1347
        %v1349 = vsel %vm1207, %v926, -inf
        %v1350 = vsel %vm1207, %v982, -inf
        %v1351 = vmax.f32 %v1349, %v1350
        %v1352 = vsel %vm1207, %v989, -inf
        %v1353 = vsel %vm1207, %v1045, -inf
        %v1354 = vmax.f32 %v1352, %v1353
        %v1355 = vsel %vm1207, %v996, -inf
        %v1356 = vsel %vm1207, %v1052, -inf
        %v1357 = vmax.f32 %v1355, %v1356
        %v1358 = vsel %vm1207, %v1003, -inf
        %v1359 = vsel %vm1207, %v1059, -inf
        %v1360 = vmax.f32 %v1358, %v1359
        %v1361 = vsel %vm1207, %v1010, -inf
        %v1362 = vsel %vm1207, %v1066, -inf
        %v1363 = vmax.f32 %v1361, %v1362
        %v1364 = vsel %vm1207, %v1017, -inf
        %v1365 = vsel %vm1207, %v1073, -inf
        %v1366 = vmax.f32 %v1364, %v1365
        %v1367 = vsel %vm1207, %v1024, -inf
        %v1368 = vsel %vm1207, %v1080, -inf
        %v1369 = vmax.f32 %v1367, %v1368
        %v1370 = vsel %vm1207, %v1031, -inf
        %v1371 = vsel %vm1207, %v1087, -inf
        %v1372 = vmax.f32 %v1370, %v1371
        %v1373 = vsel %vm1207, %v1038, -inf
        %v1374 = vsel %vm1207, %v1094, -inf
        %v1375 = vmax.f32 %v1373, %v1374
        %v1376 = vsel %vm1207, %v1101, -inf
        %v1377 = vsel %vm1207, %v1157, -inf
        %v1378 = vmax.f32 %v1376, %v1377
        %v1379 = vsel %vm1207, %v1108, -inf
        %v1380 = vsel %vm1207, %v1164, -inf
        %v1381 = vmax.f32 %v1379, %v1380
        %v1382 = vsel %vm1207, %v1115, -inf
        %v1383 = vsel %vm1207, %v1171, -inf
        %v1384 = vmax.f32 %v1382, %v1383
        %v1385 = vsel %vm1207, %v1122, -inf
        %v1386 = vsel %vm1207, %v1178, -inf
        %v1387 = vmax.f32 %v1385, %v1386
        %v1388 = vsel %vm1207, %v1129, -inf
        %v1389 = vsel %vm1207, %v1185, -inf
        %v1390 = vmax.f32 %v1388, %v1389
        %v1391 = vsel %vm1207, %v1136, -inf
        %v1392 = vsel %vm1207, %v1192, -inf
        %v1393 = vmax.f32 %v1391, %v1392
        %v1394 = vsel %vm1207, %v1143, -inf
        %v1395 = vsel %vm1207, %v1199, -inf
        %v1396 = vmax.f32 %v1394, %v1395
        %v1397 = vsel %vm1207, %v1150, -inf
        %v1398 = vsel %vm1207, %v1206, -inf
        %v1399 = vmax.f32 %v1397, %v1398
        %1400 = vst.msk [vmem:[#allocation2] sm:$0xff] %vm1207, 0.0
        %1401 = vst.msk [vmem:[#allocation2 + $0x8] sm:$0x3] %vm310, 0.0
        %s1402 = scalar_lea.vmem [#allocation2], 144
        %1403 = vst.msk [vmem:[%s1402] sm:$0xff] %vm1207, 0.0
        %1404 = vst.msk [vmem:[%s1402 + $0x8] sm:$0x3] %vm310, 0.0
        %vm1405 = vcmask 24576
        %1406 = vst.msk [vmem:[#allocation2] sm:$0x1] %vm1405, 0.0
        %1407 = vst.msk [vmem:[#allocation2 + $0x10] sm:$0x1] %vm1405, 0.0
        %1408 = vst.msk [vmem:[#allocation2 + $0x20] sm:$0x1] %vm1405, 0.0
        %1409 = vst.msk [vmem:[#allocation2 + $0x30] sm:$0x1] %vm1405, 0.0
        %1410 = vst.msk [vmem:[#allocation2 + $0x40] sm:$0x1] %vm1405, 0.0
        %1411 = vst.msk [vmem:[#allocation2 + $0x50] sm:$0x1] %vm1405, 0.0
        %1412 = vst.msk [vmem:[#allocation2 + $0x60] sm:$0x1] %vm1405, 0.0
        %1413 = vst.msk [vmem:[#allocation2 + $0x70] sm:$0x1] %vm1405, 0.0
        %1414 = vst.msk [vmem:[#allocation2 + $0x80] sm:$0x1] %vm1405, 0.0
        %1415 = vst.msk [vmem:[#allocation2 + $0x90] sm:$0x1] %vm1405, 0.0
        %1416 = vst.msk [vmem:[#allocation2 + $0x9] sm:$0x1] %vm1405, 0.0
        %1417 = vst.msk [vmem:[#allocation2 + $0x19] sm:$0x1] %vm1405, 0.0
        %1418 = vst.msk [vmem:[#allocation2 + $0x29] sm:$0x1] %vm1405, 0.0
        %1419 = vst.msk [vmem:[#allocation2 + $0x39] sm:$0x1] %vm1405, 0.0
        %1420 = vst.msk [vmem:[#allocation2 + $0x49] sm:$0x1] %vm1405, 0.0
        %1421 = vst.msk [vmem:[#allocation2 + $0x59] sm:$0x1] %vm1405, 0.0
        %1422 = vst.msk [vmem:[#allocation2 + $0x69] sm:$0x1] %vm1405, 0.0
        %1423 = vst.msk [vmem:[#allocation2 + $0x79] sm:$0x1] %vm1405, 0.0
        %1424 = vst.msk [vmem:[#allocation2 + $0x89] sm:$0x1] %vm1405, 0.0
        %1425 = vst.msk [vmem:[#allocation2 + $0x99] sm:$0x1] %vm1405, 0.0
        %vm1490 = vcmask 1041409
        %v1491 = vsel %vm1490, %v1213, %v1210
        %vm1492 = vcmask 1042434
        %v1493 = vsel %vm1492, %v1216, %v1491
        %vm1494 = vcmask 1043459
        %v1495 = vsel %vm1494, %v1219, %v1493
        %vm1496 = vcmask 1044484
        %v1497 = vsel %vm1496, %v1222, %v1495
        %vm1498 = vcmask 1045509
        %v1499 = vsel %vm1498, %v1225, %v1497
        %vm1500 = vcmask 1046534
        %v1501 = vsel %vm1500, %v1228, %v1499
        %vm1502 = vcmask 1047559
        %v1503 = vsel %vm1502, %v1231, %v1501
        %v1504 = vsel %vm1490, %v1237, %v1234
        %v1505 = vsel %vm1492, %v1240, %v1504
        %v1506 = vsel %vm1494, %v1243, %v1505
        %v1507 = vsel %vm1496, %v1246, %v1506
        %v1508 = vsel %vm1498, %v1249, %v1507
        %v1509 = vsel %vm1500, %v1252, %v1508
        %v1510 = vsel %vm1502, %v1255, %v1509
        %v1511 = vsel %vm1490, %v1261, %v1258
        %v1512 = vsel %vm1492, %v1264, %v1511
        %v1513 = vsel %vm1494, %v1267, %v1512
        %v1514 = vsel %vm1496, %v1270, %v1513
        %v1515 = vsel %vm1498, %v1273, %v1514
        %v1516 = vsel %vm1500, %v1276, %v1515
        %v1517 = vsel %vm1502, %v1279, %v1516
        %v1518 = vsel %vm1490, %v1285, %v1282
        %v1519 = vsel %vm1492, %v1288, %v1518
        %v1520 = vsel %vm1494, %v1291, %v1519
        %v1521 = vsel %vm1496, %v1294, %v1520
        %v1522 = vsel %vm1498, %v1297, %v1521
        %v1523 = vsel %vm1500, %v1300, %v1522
        %v1524 = vsel %vm1502, %v1303, %v1523
        %v1525 = vsel %vm1490, %v1309, %v1306
        %v1526 = vsel %vm1492, %v1312, %v1525
        %v1527 = vsel %vm1494, %v1315, %v1526
        %v1528 = vsel %vm1496, %v1318, %v1527
        %v1529 = vsel %vm1498, %v1321, %v1528
        %v1530 = vsel %vm1500, %v1324, %v1529
        %v1531 = vsel %vm1502, %v1327, %v1530
        %v1532 = vsel %vm1490, %v1333, %v1330
        %v1533 = vsel %vm1492, %v1336, %v1532
        %v1534 = vsel %vm1494, %v1339, %v1533
        %v1535 = vsel %vm1496, %v1342, %v1534
        %v1536 = vsel %vm1498, %v1345, %v1535
        %v1537 = vsel %vm1500, %v1348, %v1536
        %v1538 = vsel %vm1502, %v1351, %v1537
        %v1539 = vsel %vm1490, %v1357, %v1354
        %v1540 = vsel %vm1492, %v1360, %v1539
        %v1541 = vsel %vm1494, %v1363, %v1540
        %v1542 = vsel %vm1496, %v1366, %v1541
        %v1543 = vsel %vm1498, %v1369, %v1542
        %v1544 = vsel %vm1500, %v1372, %v1543
        %v1545 = vsel %vm1502, %v1375, %v1544
        %v1546 = vsel %vm1490, %v1381, %v1378
        %v1547 = vsel %vm1492, %v1384, %v1546
        %v1548 = vsel %vm1494, %v1387, %v1547
        %v1549 = vsel %vm1496, %v1390, %v1548
        %v1550 = vsel %vm1498, %v1393, %v1549
        %v1551 = vsel %vm1500, %v1396, %v1550
        %v1552 = vsel %vm1502, %v1399, %v1551
        %s1561 = scalar_lea.vmem [#allocation2], 16
        %1562 = vst.msk [vmem:[%s1561 + $0x1] sm:$0xff] %vm1207, %v1503
        %1563 = vst.msk [vmem:[%s1561 + $0x11] sm:$0xff] %vm1207, %v1510
        %1564 = vst.msk [vmem:[%s1561 + $0x21] sm:$0xff] %vm1207, %v1517
        %1565 = vst.msk [vmem:[%s1561 + $0x31] sm:$0xff] %vm1207, %v1524
        %1566 = vst.msk [vmem:[%s1561 + $0x41] sm:$0xff] %vm1207, %v1531
        %1567 = vst.msk [vmem:[%s1561 + $0x51] sm:$0xff] %vm1207, %v1538
        %1568 = vst.msk [vmem:[%s1561 + $0x61] sm:$0xff] %vm1207, %v1545
        %1569 = vst.msk [vmem:[%s1561 + $0x71] sm:$0xff] %vm1207, %v1552
        %v1570 = vld [vmem:[#allocation2] sm:$0xff]
        %v1571 = vld [vmem:[#allocation2 + $0x10] sm:$0xff]
        %v1572 = vld [vmem:[#allocation2 + $0x20] sm:$0xff]
        %v1573 = vld [vmem:[#allocation2 + $0x30] sm:$0xff]
        %v1574 = vld [vmem:[#allocation2 + $0x40] sm:$0xff]
        %v1575 = vld [vmem:[#allocation2 + $0x50] sm:$0xff]
        %v1576 = vld [vmem:[#allocation2 + $0x60] sm:$0xff]
        %v1577 = vld [vmem:[#allocation2 + $0x70] sm:$0xff]
        %v1578 = vld [vmem:[#allocation2 + $0x1] sm:$0xff]
        %v1579 = vld [vmem:[#allocation2 + $0x11] sm:$0xff]
        %v1580 = vld [vmem:[#allocation2 + $0x21] sm:$0xff]
        %v1581 = vld [vmem:[#allocation2 + $0x31] sm:$0xff]
        %v1582 = vld [vmem:[#allocation2 + $0x41] sm:$0xff]
        %v1583 = vld [vmem:[#allocation2 + $0x51] sm:$0xff]
        %v1584 = vld [vmem:[#allocation2 + $0x61] sm:$0xff]
        %v1585 = vld [vmem:[#allocation2 + $0x71] sm:$0xff]
        %v1586 = vld [vmem:[#allocation2 + $0x2] sm:$0xff]
        %v1587 = vld [vmem:[#allocation2 + $0x12] sm:$0xff]
        %v1588 = vld [vmem:[#allocation2 + $0x22] sm:$0xff]
        %v1589 = vld [vmem:[#allocation2 + $0x32] sm:$0xff]
        %v1590 = vld [vmem:[#allocation2 + $0x42] sm:$0xff]
        %v1591 = vld [vmem:[#allocation2 + $0x52] sm:$0xff]
        %v1592 = vld [vmem:[#allocation2 + $0x62] sm:$0xff]
        %v1593 = vld [vmem:[#allocation2 + $0x72] sm:$0xff]
        %v1594 = vld [vmem:[%s1561] sm:$0xff]
        %v1595 = vld [vmem:[%s1561 + $0x10] sm:$0xff]
        %v1596 = vld [vmem:[%s1561 + $0x20] sm:$0xff]
        %v1597 = vld [vmem:[%s1561 + $0x30] sm:$0xff]
        %v1598 = vld [vmem:[%s1561 + $0x40] sm:$0xff]
        %v1599 = vld [vmem:[%s1561 + $0x50] sm:$0xff]
        %v1600 = vld [vmem:[%s1561 + $0x60] sm:$0xff]
        %v1601 = vld [vmem:[%s1561 + $0x70] sm:$0xff]
        %v1602 = vld [vmem:[%s1561 + $0x1] sm:$0xff]
        %v1603 = vld [vmem:[%s1561 + $0x11] sm:$0xff]
        %v1604 = vld [vmem:[%s1561 + $0x21] sm:$0xff]
        %v1605 = vld [vmem:[%s1561 + $0x31] sm:$0xff]
        %v1606 = vld [vmem:[%s1561 + $0x41] sm:$0xff]
        %v1607 = vld [vmem:[%s1561 + $0x51] sm:$0xff]
        %v1608 = vld [vmem:[%s1561 + $0x61] sm:$0xff]
        %v1609 = vld [vmem:[%s1561 + $0x71] sm:$0xff]
        %v1610 = vld [vmem:[%s1561 + $0x2] sm:$0xff]
        %v1611 = vld [vmem:[%s1561 + $0x12] sm:$0xff]
        %v1612 = vld [vmem:[%s1561 + $0x22] sm:$0xff]
        %v1613 = vld [vmem:[%s1561 + $0x32] sm:$0xff]
        %v1614 = vld [vmem:[%s1561 + $0x42] sm:$0xff]
        %v1615 = vld [vmem:[%s1561 + $0x52] sm:$0xff]
        %v1616 = vld [vmem:[%s1561 + $0x62] sm:$0xff]
        %v1617 = vld [vmem:[%s1561 + $0x72] sm:$0xff]
        %s1618 = scalar_lea.vmem [#allocation2], 32
        %v1619 = vld [vmem:[%s1618] sm:$0xff]
        %v1620 = vld [vmem:[%s1618 + $0x10] sm:$0xff]
        %v1621 = vld [vmem:[%s1618 + $0x20] sm:$0xff]
        %v1622 = vld [vmem:[%s1618 + $0x30] sm:$0xff]
        %v1623 = vld [vmem:[%s1618 + $0x40] sm:$0xff]
        %v1624 = vld [vmem:[%s1618 + $0x50] sm:$0xff]
        %v1625 = vld [vmem:[%s1618 + $0x60] sm:$0xff]
        %v1626 = vld [vmem:[%s1618 + $0x70] sm:$0xff]
        %v1627 = vld [vmem:[%s1618 + $0x1] sm:$0xff]
        %v1628 = vld [vmem:[%s1618 + $0x11] sm:$0xff]
        %v1629 = vld [vmem:[%s1618 + $0x21] sm:$0xff]
        %v1630 = vld [vmem:[%s1618 + $0x31] sm:$0xff]
        %v1631 = vld [vmem:[%s1618 + $0x41] sm:$0xff]
        %v1632 = vld [vmem:[%s1618 + $0x51] sm:$0xff]
        %v1633 = vld [vmem:[%s1618 + $0x61] sm:$0xff]
        %v1634 = vld [vmem:[%s1618 + $0x71] sm:$0xff]
        %v1635 = vld [vmem:[%s1618 + $0x2] sm:$0xff]
        %v1636 = vld [vmem:[%s1618 + $0x12] sm:$0xff]
        %v1637 = vld [vmem:[%s1618 + $0x22] sm:$0xff]
        %v1638 = vld [vmem:[%s1618 + $0x32] sm:$0xff]
        %v1639 = vld [vmem:[%s1618 + $0x42] sm:$0xff]
        %v1640 = vld [vmem:[%s1618 + $0x52] sm:$0xff]
        %v1641 = vld [vmem:[%s1618 + $0x62] sm:$0xff]
        %v1642 = vld [vmem:[%s1618 + $0x72] sm:$0xff]
        %1651 = vrot.lane.b32.xlu0 %v1578, 4
        %v1652 = vpop.permute.xlu0 %1651
        %1653 = vrot.lane.b32.xlu0 %v1579, 4
        %v1654 = vpop.permute.xlu0 %1653
        %1655 = vrot.lane.b32.xlu0 %v1580, 4
        %v1656 = vpop.permute.xlu0 %1655
        %1657 = vrot.lane.b32.xlu0 %v1581, 4
        %v1658 = vpop.permute.xlu0 %1657
        %1659 = vrot.lane.b32.xlu0 %v1582, 4
        %v1660 = vpop.permute.xlu0 %1659
        %1661 = vrot.lane.b32.xlu0 %v1583, 4
        %v1662 = vpop.permute.xlu0 %1661
        %1663 = vrot.lane.b32.xlu0 %v1584, 4
        %v1664 = vpop.permute.xlu0 %1663
        %1665 = vrot.lane.b32.xlu0 %v1585, 4
        %v1666 = vpop.permute.xlu0 %1665
        %1683 = vrot.lane.b32.xlu0 %v1586, 8
        %v1684 = vpop.permute.xlu0 %1683
        %1685 = vrot.lane.b32.xlu0 %v1587, 8
        %v1686 = vpop.permute.xlu0 %1685
        %1687 = vrot.lane.b32.xlu0 %v1588, 8
        %v1688 = vpop.permute.xlu0 %1687
        %1689 = vrot.lane.b32.xlu0 %v1589, 8
        %v1690 = vpop.permute.xlu0 %1689
        %1691 = vrot.lane.b32.xlu0 %v1590, 8
        %v1692 = vpop.permute.xlu0 %1691
        %1693 = vrot.lane.b32.xlu0 %v1591, 8
        %v1694 = vpop.permute.xlu0 %1693
        %1695 = vrot.lane.b32.xlu0 %v1592, 8
        %v1696 = vpop.permute.xlu0 %1695
        %1697 = vrot.lane.b32.xlu0 %v1593, 8
        %v1698 = vpop.permute.xlu0 %1697
        %1715 = vrot.lane.b32.xlu0 %v1594, 12
        %v1716 = vpop.permute.xlu0 %1715
        %1717 = vrot.lane.b32.xlu0 %v1595, 12
        %v1718 = vpop.permute.xlu0 %1717
        %1719 = vrot.lane.b32.xlu0 %v1596, 12
        %v1720 = vpop.permute.xlu0 %1719
        %1721 = vrot.lane.b32.xlu0 %v1597, 12
        %v1722 = vpop.permute.xlu0 %1721
        %1723 = vrot.lane.b32.xlu0 %v1598, 12
        %v1724 = vpop.permute.xlu0 %1723
        %1725 = vrot.lane.b32.xlu0 %v1599, 12
        %v1726 = vpop.permute.xlu0 %1725
        %1727 = vrot.lane.b32.xlu0 %v1600, 12
        %v1728 = vpop.permute.xlu0 %1727
        %1729 = vrot.lane.b32.xlu0 %v1601, 12
        %v1730 = vpop.permute.xlu0 %1729
        %1747 = vrot.lane.b32.xlu0 %v1602, 16
        %v1748 = vpop.permute.xlu0 %1747
        %1749 = vrot.lane.b32.xlu0 %v1603, 16
        %v1750 = vpop.permute.xlu0 %1749
        %1751 = vrot.lane.b32.xlu0 %v1604, 16
        %v1752 = vpop.permute.xlu0 %1751
        %1753 = vrot.lane.b32.xlu0 %v1605, 16
        %v1754 = vpop.permute.xlu0 %1753
        %1755 = vrot.lane.b32.xlu0 %v1606, 16
        %v1756 = vpop.permute.xlu0 %1755
        %1757 = vrot.lane.b32.xlu0 %v1607, 16
        %v1758 = vpop.permute.xlu0 %1757
        %1759 = vrot.lane.b32.xlu0 %v1608, 16
        %v1760 = vpop.permute.xlu0 %1759
        %1761 = vrot.lane.b32.xlu0 %v1609, 16
        %v1762 = vpop.permute.xlu0 %1761
        %1779 = vrot.lane.b32.xlu0 %v1610, 20
        %v1780 = vpop.permute.xlu0 %1779
        %1781 = vrot.lane.b32.xlu0 %v1611, 20
        %v1782 = vpop.permute.xlu0 %1781
        %1783 = vrot.lane.b32.xlu0 %v1612, 20
        %v1784 = vpop.permute.xlu0 %1783
        %1785 = vrot.lane.b32.xlu0 %v1613, 20
        %v1786 = vpop.permute.xlu0 %1785
        %1787 = vrot.lane.b32.xlu0 %v1614, 20
        %v1788 = vpop.permute.xlu0 %1787
        %1789 = vrot.lane.b32.xlu0 %v1615, 20
        %v1790 = vpop.permute.xlu0 %1789
        %1791 = vrot.lane.b32.xlu0 %v1616, 20
        %v1792 = vpop.permute.xlu0 %1791
        %1793 = vrot.lane.b32.xlu0 %v1617, 20
        %v1794 = vpop.permute.xlu0 %1793
        %1811 = vrot.lane.b32.xlu0 %v1619, 24
        %v1812 = vpop.permute.xlu0 %1811
        %1813 = vrot.lane.b32.xlu0 %v1620, 24
        %v1814 = vpop.permute.xlu0 %1813
        %1815 = vrot.lane.b32.xlu0 %v1621, 24
        %v1816 = vpop.permute.xlu0 %1815
        %1817 = vrot.lane.b32.xlu0 %v1622, 24
        %v1818 = vpop.permute.xlu0 %1817
        %1819 = vrot.lane.b32.xlu0 %v1623, 24
        %v1820 = vpop.permute.xlu0 %1819
        %1821 = vrot.lane.b32.xlu0 %v1624, 24
        %v1822 = vpop.permute.xlu0 %1821
        %1823 = vrot.lane.b32.xlu0 %v1625, 24
        %v1824 = vpop.permute.xlu0 %1823
        %1825 = vrot.lane.b32.xlu0 %v1626, 24
        %v1826 = vpop.permute.xlu0 %1825
        %1843 = vrot.lane.b32.xlu0 %v1627, 28
        %v1844 = vpop.permute.xlu0 %1843
        %1845 = vrot.lane.b32.xlu0 %v1628, 28
        %v1846 = vpop.permute.xlu0 %1845
        %1847 = vrot.lane.b32.xlu0 %v1629, 28
        %v1848 = vpop.permute.xlu0 %1847
        %1849 = vrot.lane.b32.xlu0 %v1630, 28
        %v1850 = vpop.permute.xlu0 %1849
        %1851 = vrot.lane.b32.xlu0 %v1631, 28
        %v1852 = vpop.permute.xlu0 %1851
        %1853 = vrot.lane.b32.xlu0 %v1632, 28
        %v1854 = vpop.permute.xlu0 %1853
        %1855 = vrot.lane.b32.xlu0 %v1633, 28
        %v1856 = vpop.permute.xlu0 %1855
        %1857 = vrot.lane.b32.xlu0 %v1634, 28
        %v1858 = vpop.permute.xlu0 %1857
        %1875 = vrot.lane.b32.xlu0 %v1635, 32
        %v1876 = vpop.permute.xlu0 %1875
        %1877 = vrot.lane.b32.xlu0 %v1636, 32
        %v1878 = vpop.permute.xlu0 %1877
        %1879 = vrot.lane.b32.xlu0 %v1637, 32
        %v1880 = vpop.permute.xlu0 %1879
        %1881 = vrot.lane.b32.xlu0 %v1638, 32
        %v1882 = vpop.permute.xlu0 %1881
        %1883 = vrot.lane.b32.xlu0 %v1639, 32
        %v1884 = vpop.permute.xlu0 %1883
        %1885 = vrot.lane.b32.xlu0 %v1640, 32
        %v1886 = vpop.permute.xlu0 %1885
        %1887 = vrot.lane.b32.xlu0 %v1641, 32
        %v1888 = vpop.permute.xlu0 %1887
        %1889 = vrot.lane.b32.xlu0 %v1642, 32
        %v1890 = vpop.permute.xlu0 %1889
        %v1899 = vsel %vm1207, %v1570, %v1652
        %v1900 = vsel %vm1207, %v1571, %v1654
        %v1901 = vsel %vm1207, %v1572, %v1656
        %v1902 = vsel %vm1207, %v1573, %v1658
        %v1903 = vsel %vm1207, %v1574, %v1660
        %v1904 = vsel %vm1207, %v1575, %v1662
        %v1905 = vsel %vm1207, %v1576, %v1664
        %v1906 = vsel %vm1207, %v1577, %v1666
        %vm1907 = vcmask 64512
        %v1908 = vsel %vm1907, %v1899, %v1684
        %v1909 = vsel %vm1907, %v1900, %v1686
        %v1910 = vsel %vm1907, %v1901, %v1688
        %v1911 = vsel %vm1907, %v1902, %v1690
        %v1912 = vsel %vm1907, %v1903, %v1692
        %v1913 = vsel %vm1907, %v1904, %v1694
        %v1914 = vsel %vm1907, %v1905, %v1696
        %v1915 = vsel %vm1907, %v1906, %v1698
        %vm1916 = vcmask 97280
        %v1917 = vsel %vm1916, %v1908, %v1716
        %v1918 = vsel %vm1916, %v1909, %v1718
        %v1919 = vsel %vm1916, %v1910, %v1720
        %v1920 = vsel %vm1916, %v1911, %v1722
        %v1921 = vsel %vm1916, %v1912, %v1724
        %v1922 = vsel %vm1916, %v1913, %v1726
        %v1923 = vsel %vm1916, %v1914, %v1728
        %v1924 = vsel %vm1916, %v1915, %v1730
        %vm1925 = vcmask 130048
        %v1926 = vsel %vm1925, %v1917, %v1748
        %v1927 = vsel %vm1925, %v1918, %v1750
        %v1928 = vsel %vm1925, %v1919, %v1752
        %v1929 = vsel %vm1925, %v1920, %v1754
        %v1930 = vsel %vm1925, %v1921, %v1756
        %v1931 = vsel %vm1925, %v1922, %v1758
        %v1932 = vsel %vm1925, %v1923, %v1760
        %v1933 = vsel %vm1925, %v1924, %v1762
        %vm1934 = vcmask 162816
        %v1935 = vsel %vm1934, %v1926, %v1780
        %v1936 = vsel %vm1934, %v1927, %v1782
        %v1937 = vsel %vm1934, %v1928, %v1784
        %v1938 = vsel %vm1934, %v1929, %v1786
        %v1939 = vsel %vm1934, %v1930, %v1788
        %v1940 = vsel %vm1934, %v1931, %v1790
        %v1941 = vsel %vm1934, %v1932, %v1792
        %v1942 = vsel %vm1934, %v1933, %v1794
        %vm1943 = vcmask 195584
        %v1944 = vsel %vm1943, %v1935, %v1812
        %v1945 = vsel %vm1943, %v1936, %v1814
        %v1946 = vsel %vm1943, %v1937, %v1816
        %v1947 = vsel %vm1943, %v1938, %v1818
        %v1948 = vsel %vm1943, %v1939, %v1820
        %v1949 = vsel %vm1943, %v1940, %v1822
        %v1950 = vsel %vm1943, %v1941, %v1824
        %v1951 = vsel %vm1943, %v1942, %v1826
        %vm1952 = vcmask 228352
        %v1953 = vsel %vm1952, %v1944, %v1844
        %v1954 = vsel %vm1952, %v1945, %v1846
        %v1955 = vsel %vm1952, %v1946, %v1848
        %v1956 = vsel %vm1952, %v1947, %v1850
        %v1957 = vsel %vm1952, %v1948, %v1852
        %v1958 = vsel %vm1952, %v1949, %v1854
        %v1959 = vsel %vm1952, %v1950, %v1856
        %v1960 = vsel %vm1952, %v1951, %v1858
        %vm1961 = vcmask 261120
        %v1962 = vsel %vm1961, %v1953, %v1876
        %v1963 = vsel %vm1961, %v1954, %v1878
        %v1964 = vsel %vm1961, %v1955, %v1880
        %v1965 = vsel %vm1961, %v1956, %v1882
        %v1966 = vsel %vm1961, %v1957, %v1884
        %v1967 = vsel %vm1961, %v1958, %v1886
        %v1968 = vsel %vm1961, %v1959, %v1888
        %v1969 = vsel %vm1961, %v1960, %v1890
        %v1970 = vld [vmem:[%s1] sm:$0xff]
        %v1971 = vld [vmem:[%s1 + $0x8] sm:$0xff]
        %v1972 = vld [vmem:[%s1 + $0x10] sm:$0xff]
        %v1973 = vld [vmem:[%s1 + $0x18] sm:$0xff]
        %v1974 = vld [vmem:[%s1 + $0x20] sm:$0xf]
        %vm1975 = vcmask 293888
        %v1977 = vsel %vm1975, %v1962, 0
        %v1980 = vsel %vm1975, %v1963, 0
        %v1983 = vsel %vm1975, %v1964, 0
        %v1986 = vsel %vm1975, %v1965, 0
        %v1989 = vsel %vm1975, %v1966, 0
        %v1992 = vsel %vm1975, %v1967, 0
        %v1995 = vsel %vm1975, %v1968, 0
        %v1998 = vsel %vm1975, %v1969, 0
        %vm2000 = vcmask 1043456
        %v2002 = vsel %vm2000, %v1974, 0
        %2004 = vmatprep.subr.mxu0 0.0
        %2005 = vmatpush1.msra.mxu0 0.0
        %2006 = vmatprep.subr.mxu0 0.0
        %2007 = vmatpush1.msra.mxu0 0.0
        %2008 = vmatprep.subr.mxu0 0.0
        %2009 = vmatpush1.msra.mxu0 0.0
        %2010 = vmatprep.subr.mxu0 0.0
        %2011 = vmatpush1.msra.mxu0 0.0
        %2012 = vmatprep.subr.mxu0 0.0
        %2013 = vmatpush1.msra.mxu0 0.0
        %2014 = vmatprep.subr.mxu0 0.0
        %2015 = vmatpush1.msra.mxu0 0.0
        %2016 = vmatprep.subr.mxu0 0.0
        %2017 = vmatpush1.msra.mxu0 0.0
        %2018 = vmatprep.subr.mxu0 0.0
        %2019 = vmatpush1.msra.mxu0 0.0
        %2020 = vmatprep.subr.mxu0 0.0
        %2021 = vmatpush1.msra.mxu0 0.0
        %2022 = vmatprep.subr.mxu0 0.0
        %2023 = vmatpush1.msra.mxu0 0.0
        %2024 = vmatprep.subr.mxu0 0.0
        %2025 = vmatpush1.msra.mxu0 0.0
        %2026 = vmatprep.subr.mxu0 0.0
        %2027 = vmatpush1.msra.mxu0 %v2002
        %2028 = vmatprep.subr.mxu0 0.0
        %2029 = vmatpush1.msra.mxu0 %v1973
        %2030 = vmatprep.subr.mxu0 0.0
        %2031 = vmatpush1.msra.mxu0 %v1972
        %2032 = vmatprep.subr.mxu0 0.0
        %2033 = vmatpush1.msra.mxu0 %v1971
        %2034 = vmatprep.subr.mxu0 0.0
        %2035 = vmatpush1.msra.mxu0 %v1970
        %2036 = vmatprep.subr.mxu0 0.0
        %2037 = vmatpush2.msra.mxu0 0.0
        %2038 = vmatprep.subr.mxu0 0.0
        %2039 = vmatpush2.msra.mxu0 0.0
        %2040 = vmatprep.subr.mxu0 0.0
        %2041 = vmatpush2.msra.mxu0 0.0
        %2042 = vmatprep.subr.mxu0 0.0
        %2043 = vmatpush2.msra.mxu0 0.0
        %2044 = vmatprep.subr.mxu0 0.0
        %2045 = vmatpush2.msra.mxu0 0.0
        %2046 = vmatprep.subr.mxu0 0.0
        %2047 = vmatpush2.msra.mxu0 0.0
        %2048 = vmatprep.subr.mxu0 0.0
        %2049 = vmatpush2.msra.mxu0 0.0
        %2050 = vmatprep.subr.mxu0 0.0
        %2051 = vmatpush2.msra.mxu0 0.0
        %2052 = vmatprep.subr.mxu0 0.0
        %2053 = vmatpush2.msra.mxu0 0.0
        %2054 = vmatprep.subr.mxu0 0.0
        %2055 = vmatpush2.msra.mxu0 0.0
        %2056 = vmatprep.subr.mxu0 0.0
        %2057 = vmatpush2.msra.mxu0 0.0
        %2058 = vmatprep.subr.mxu0 0.0
        %2059 = vmatpush2.msra.mxu0 0.0
        %2060 = vmatprep.subr.mxu0 0.0
        %2061 = vmatpush2.msra.mxu0 0.0
        %2062 = vmatprep.subr.mxu0 0.0
        %2063 = vmatpush2.msra.mxu0 0.0
        %2064 = vmatprep.subr.mxu0 0.0
        %2065 = vmatpush2.msra.mxu0 0.0
        %2066 = vmatprep.subr.mxu0 0.0
        %2067 = vmatpush2.msra.mxu0 0.0
        %2068 = vmatprep.mubr.f32.mxu0 0.0
        %2069 = vmatmul.mubr.f32.gmra.mxu0 %v1977
        %v2070 = vpop.f32.mrf.mxu0
        %v2071 = vadd.f32 0.0, %v2070
        %v2072 = vpop.f32.mrf.mxu0
        %2073 = vmatprep.mubr.f32.mxu0 0.0
        %2074 = vmatmul.mubr.f32.gmra.mxu0 %v1980
        %v2075 = vpop.f32.mrf.mxu0
        %v2076 = vadd.f32 0.0, %v2075
        %v2077 = vpop.f32.mrf.mxu0
        %2078 = vmatprep.mubr.f32.mxu0 0.0
        %2079 = vmatmul.mubr.f32.gmra.mxu0 %v1983
        %v2080 = vpop.f32.mrf.mxu0
        %v2081 = vadd.f32 0.0, %v2080
        %v2082 = vpop.f32.mrf.mxu0
        %2083 = vmatprep.mubr.f32.mxu0 0.0
        %2084 = vmatmul.mubr.f32.gmra.mxu0 %v1986
        %v2085 = vpop.f32.mrf.mxu0
        %v2086 = vadd.f32 0.0, %v2085
        %v2087 = vpop.f32.mrf.mxu0
        %2088 = vmatprep.mubr.f32.mxu0 0.0
        %2089 = vmatmul.mubr.f32.gmra.mxu0 %v1989
        %v2090 = vpop.f32.mrf.mxu0
        %v2091 = vadd.f32 0.0, %v2090
        %v2092 = vpop.f32.mrf.mxu0
        %2093 = vmatprep.mubr.f32.mxu0 0.0
        %2094 = vmatmul.mubr.f32.gmra.mxu0 %v1992
        %v2095 = vpop.f32.mrf.mxu0
        %v2096 = vadd.f32 0.0, %v2095
        %v2097 = vpop.f32.mrf.mxu0
        %2098 = vmatprep.mubr.f32.mxu0 0.0
        %2099 = vmatmul.mubr.f32.gmra.mxu0 %v1995
        %v2100 = vpop.f32.mrf.mxu0
        %v2101 = vadd.f32 0.0, %v2100
        %v2102 = vpop.f32.mrf.mxu0
        %2103 = vmatprep.mubr.f32.mxu0 0.0
        %2104 = vmatmul.mubr.f32.gmra.mxu0 %v1998
        %v2105 = vpop.f32.mrf.mxu0
        %v2106 = vadd.f32 0.0, %v2105
        %v2107 = vpop.f32.mrf.mxu0
        %2108 = vdwg.mxu0
        %2109 = vst.msk [vmem:[%s181] sm:$0xff] %vm1907, %v2071
        %2110 = vst.msk [vmem:[%s181 + $0x8] sm:$0xff] %vm1907, %v2076
        %2111 = vst.msk [vmem:[%s181 + $0x10] sm:$0xff] %vm1907, %v2081
        %2112 = vst.msk [vmem:[%s181 + $0x18] sm:$0xff] %vm1907, %v2086
        %2113 = vst.msk [vmem:[%s181 + $0x20] sm:$0xff] %vm1907, %v2091
        %2114 = vst.msk [vmem:[%s181 + $0x28] sm:$0xff] %vm1907, %v2096
        %2115 = vst.msk [vmem:[%s181 + $0x30] sm:$0xff] %vm1907, %v2101
        %2116 = vst.msk [vmem:[%s181 + $0x38] sm:$0xff] %vm1907, %v2106
        %v2117 = vsel %vm1907, %v2071, 0.0
        %v2118 = vsel %vm1907, %v2076, 0.0
        %v2119 = vadd.f32 %v2117, %v2118
        %v2120 = vsel %vm1907, %v2081, 0.0
        %v2121 = vadd.f32 %v2119, %v2120
        %v2122 = vsel %vm1907, %v2086, 0.0
        %v2123 = vadd.f32 %v2121, %v2122
        %v2124 = vsel %vm1907, %v2091, 0.0
        %v2125 = vadd.f32 %v2123, %v2124
        %v2126 = vsel %vm1907, %v2096, 0.0
        %v2127 = vadd.f32 %v2125, %v2126
        %v2128 = vsel %vm1907, %v2101, 0.0
        %v2129 = vadd.f32 %v2127, %v2128
        %v2130 = vsel %vm1907, %v2106, 0.0
        %v2131 = vadd.f32 %v2129, %v2130
        %v2132 = vrot.slane %v2131, 4
        %v2133 = vadd.f32 %v2131, %v2132
        %v2134 = vrot.slane %v2133, 2
        %v2135 = vadd.f32 %v2133, %v2134
        %v2136 = vrot.slane %v2135, 1
        %v2137 = vadd.f32 %v2135, %v2136
        %v2138 = vmul.f32 %v2071, %v2071
        %v2139 = vmul.f32 %v2076, %v2076
        %v2140 = vmul.f32 %v2081, %v2081
        %v2141 = vmul.f32 %v2086, %v2086
        %v2142 = vmul.f32 %v2091, %v2091
        %v2143 = vmul.f32 %v2096, %v2096
        %v2144 = vmul.f32 %v2101, %v2101
        %v2145 = vmul.f32 %v2106, %v2106
        %v2146 = vsel %vm1907, %v2138, 0.0
        %v2147 = vsel %vm1907, %v2139, 0.0
        %v2148 = vadd.f32 %v2146, %v2147
        %v2149 = vsel %vm1907, %v2140, 0.0
        %v2150 = vadd.f32 %v2148, %v2149
        %v2151 = vsel %vm1907, %v2141, 0.0
        %v2152 = vadd.f32 %v2150, %v2151
        %v2153 = vsel %vm1907, %v2142, 0.0
        %v2154 = vadd.f32 %v2152, %v2153
        %v2155 = vsel %vm1907, %v2143, 0.0
        %v2156 = vadd.f32 %v2154, %v2155
        %v2157 = vsel %vm1907, %v2144, 0.0
        %v2158 = vadd.f32 %v2156, %v2157
        %v2159 = vsel %vm1907, %v2145, 0.0
        %v2160 = vadd.f32 %v2158, %v2159
        %v2161 = vrot.slane %v2160, 4
        %v2162 = vadd.f32 %v2160, %v2161
        %v2163 = vrot.slane %v2162, 2
        %v2164 = vadd.f32 %v2162, %v2163
        %v2165 = vrot.slane %v2164, 1
        %v2166 = vadd.f32 %v2164, %v2165
        %vm2167 = vcmask 1040384
        %v2168 = vsel %vm2167, %v2137, %v2166
        %vm2169 = vcmask 58368
        %2170 = vst.msk [vmem:[%s171] sm:$0x3] %vm2169, %v2168
        %p2171 = scmp.lt.s32.totalorder %s18, 1
        %s2172 = scalar_select %p2171, %s18, 1
        %s2173 = smul.addr %s2172, 8
        %s2174 = smul.addr %s2173, 8
        %s2175 = scalar_lea.vmem %s2, %s2174
        %s2176 = sand.u32 %s99, 1
        %s2177 = scalar_lea.sflag [#allocation4], %s2176
        %s2178 = sand.u32 %s99, 1
        %s2179 = smul.addr %s2178, 2
        %s2180 = scalar_lea.vmem [#allocation3], %s2179
        // Predicated region
        $region29: #{tpu_custom_call.1} parent=27 // pred_check
          %p2181 = pneg %p83
        $region30: #{tpu_custom_call.1} parent=27 // pred_check_branch
          %2183 = sbr.rel (%p2181) target = $region32
        $region31: #{tpu_custom_call.1} parent=27 // pred_region
          _
        $region32: #{tpu_custom_call.1} parent=27 // pred_fallthru
          _
        // Predicated region
        $region33: #{tpu_custom_call.1} parent=27 // pred_check
          %p2184 = pneg %p109
        $region34: #{tpu_custom_call.1} parent=27 // pred_check_branch
          %2186 = sbr.rel (%p2184) target = $region36
        $region35: #{tpu_custom_call.1} parent=27 // pred_region
          %s2188 = ssub.s32 32, 32
          %2189 = vsyncadd %s2177, %s2188
          %s2190 = smul.addr %s18, 32
          %s2191 = scalar_lea.hbm %s3, %s2190
          %s2193 = sshll.u32 %s2180, 4
          %s2194 = int_to_ptr.vmem [resolvable:$true] %s2193
          %2196 = dma.vmem_to_hbm [thread:$0]  %s2194, 32, %s2191, %s2177
        $region36: #{tpu_custom_call.1} parent=27 // pred_fallthru
          _
      $region28: #{tpu_custom_call.1} parent=5 // pred_fallthru
        _
      %p2197 = scmp.le.s32.totalorder 2, %s13
      // Predicated region
      $region37: #{tpu_custom_call.1} parent=5 // pred_check
        %p2198 = pneg %p2197
      $region38: #{tpu_custom_call.1} parent=5 // pred_check_branch
        %2200 = sbr.rel (%p2198) target = $region40
      $region39: #{tpu_custom_call.1} parent=5 // pred_region
        %s2201 = ssub.s32 %s13, 2
        // Predicated region
        $region41: #{tpu_custom_call.1} parent=39 // pred_check
          %p2202 = pneg %p89
        $region42: #{tpu_custom_call.1} parent=39 // pred_check_branch
          %2204 = sbr.rel (%p2202) target = $region44
        $region43: #{tpu_custom_call.1} parent=39 // pred_region
          %p2205 = scmp.lt.s32.totalorder %s19, 1
          %s2206 = scalar_select %p2205, %s19, 1
          %s2207 = smul.addr %s2206, 8
          %s2208 = smul.addr %s2207, 8
          %s2209 = scalar_lea.vmem %s2, %s2208
        $region44: #{tpu_custom_call.1} parent=39 // pred_fallthru
          _
        // Predicated region
        $region45: #{tpu_custom_call.1} parent=39 // pred_check
          %p2210 = pneg %p115
        $region46: #{tpu_custom_call.1} parent=39 // pred_check_branch
          %2212 = sbr.rel (%p2210) target = $region48
        $region47: #{tpu_custom_call.1} parent=39 // pred_region
          %s2213 = sand.u32 %s100, 1
          %s2214 = scalar_lea.sflag [#allocation4], %s2213
          %s2215 = sand.u32 %s100, 1
          %s2216 = smul.addr %s2215, 2
          %s2217 = scalar_lea.vmem [#allocation3], %s2216
          %2218 = dma.done %s2214, 32
        $region48: #{tpu_custom_call.1} parent=39 // pred_fallthru
          _
      $region40: #{tpu_custom_call.1} parent=5 // pred_fallthru
        _
    $region6: #{tpu_custom_call.1} parent=1 // loop_footer
      %s17 = sadd.s32 1, %s13
    $region7: #{tpu_custom_call.1} parent=1 // loop_footer_branch
      %12 = sbr.rel target = $region3
    $region8: #{tpu_custom_call.1} parent=1 // loop_exit
      _
    %2219 = vsyncpa [#allocation4], 1
    %s2220 = scalar_lea.sflag [#allocation4], 1
    %2221 = vsyncpa %s2220, 1

</llo_original>
